<compile_context>
chip_gen: v6e
topology: v6e:2x2x1
jax: 0.10.0
libtpu: 0.0.40
codegen_flags: <defaults>
</compile_context>

<pallas_src>
import functools

import jax
import jax.numpy as jnp
from jax.experimental import pallas as pl
from jax.experimental.pallas import tpu as pltpu


LANE = 128                     # lane width: channel dims padded to this
_ACT_DTYPE = jnp.bfloat16      # inter-layer activations
_ADJ_DTYPE = jnp.int8          # 0/1 adjacency mask in HBM (half bf16 bytes)
_NEG_INF = -1e30               # poisons padded logit lanes of the final bias


def _round_up(v, m):
    return (v + m - 1) // m * m


def _pad2(a, rows, cols, value=0.0):
    return jnp.pad(a, ((0, rows - a.shape[0]), (0, cols - a.shape[1])),
                   constant_values=value)


def _vmem_config():
    """Generation-dependent VMEM limit/budget (v5e/v6e: 128 MiB, v7x: 64 MiB/TC)."""
    cap = 64 * 1024 * 1024
    try:
        cap = int(getattr(pltpu.get_tpu_info(), "vmem_capacity_bytes", cap)) or cap
    except Exception:
        pass
    limit = min(cap * 3 // 4, 112 * 1024 * 1024)   # 48 MiB on v7x, 96 MiB on v5e/v6e
    budget = limit * 3 // 4                        # headroom for tile derivation
    return int(limit), int(budget)


def _choose_row_tile(n_pad, cin_p, cout_p, budget):
    """Largest 128/256-aligned row tile whose pipeline footprint fits `budget`."""
    # Grid-invariant operands (x, W_l, W_r, bias) are still double-buffered by
    # the default pipeline even though their index_map is constant.
    # TODO(synk): single-buffer them to reclaim this VMEM.
    fixed = 2 * (n_pad * cin_p * 2            # resident x (bf16)
                 + 2 * cin_p * cout_p * 2     # W_l + W_r (bf16)
                 + cout_p * 4)                # bias row (f32)
    per_row = (2 * n_pad * 1                  # int8 A tile (double-buffered)
               + n_pad * 2                    # in-kernel bf16 upcast of the A tile
               + 2 * 4                        # deg_inv column (double-buffered)
               + 2 * cout_p * 4               # output tile (f32 upper bound)
               + cin_p * 4 + cout_p * 8)      # agg / h f32 temporaries
    avail = budget - fixed
    if avail < per_row * LANE:
        # TODO(synk): fall back to K-tiling x (column blocks of A x row blocks
        # of x with an f32 accumulator scratch) instead of fully-resident x.
        raise ValueError(
            "SAGE Pallas kernel: resident-x footprint exceeds the VMEM budget "
            f"(fixed={fixed}B, budget={budget}B); graph too large for this path.")
    tm = min(1024, n_pad, avail // per_row // LANE * LANE)
    if tm >= 256:              # 256-aligned tiles feed v6e/v7x's 256-wide MXU
        tm = tm // 256 * 256
    return int(tm)


# ----------------------------------------------------------------------------
# Pallas kernels
# ----------------------------------------------------------------------------
def _sage_projected(a_ref, dinv_ref, x_ref, wl_ref, wr_ref, b_ref, *, tm):
    """h = (rownorm(A) @ x) @ W_l + x @ W_r + b   (f32 accumulation)."""
    i = pl.program_id(0)
    # Aggregation: int8 0/1 mask upcast to bf16 feeds the MXU; the exact f32
    # 1/deg row scale is applied after the dot (mean aggregation stays exact).
    a_bf = a_ref[...].astype(jnp.bfloat16)
    agg = jnp.dot(a_bf, x_ref[...], preferred_element_type=jnp.float32)
    agg = agg * dinv_ref[...]
    row0 = pl.multiple_of(i * tm, tm)
    x_tile = x_ref[pl.ds(row0, tm), :]
    # Two bf16 MXU dots with f32 accumulation (no concat copy, full MXU rate).
    h = jnp.dot(agg.astype(jnp.bfloat16), wl_ref[...],
                preferred_element_type=jnp.float32)
    h = h + jnp.dot(x_tile, wr_ref[...], preferred_element_type=jnp.float32)
    return h + b_ref[...]


def _sage_hidden_kernel(a_ref, dinv_ref, x_ref, wl_ref, wr_ref, b_ref, o_ref, *, tm):
    """SAGEConv (BN pre-folded into W/b) + ReLU."""
    h = _sage_projected(a_ref, dinv_ref, x_ref, wl_ref, wr_ref, b_ref, tm=tm)
    o_ref[...] = jnp.maximum(h, 0.0).astype(o_ref.dtype)


def _sage_final_kernel(a_ref, dinv_ref, x_ref, wl_ref, wr_ref, b_ref, o_ref, *, tm):
    """SAGEConv + log_softmax; padded logit lanes carry a -1e30 bias so the
    plain reduction is exact on the real lanes (mask is free)."""
    h = _sage_projected(a_ref, dinv_ref, x_ref, wl_ref, wr_ref, b_ref, tm=tm)
    m = jnp.max(h, axis=-1, keepdims=True)
    p = jnp.exp(h - m)
    lse = m + jnp.log(jnp.sum(p, axis=-1, keepdims=True))
    o_ref[...] = (h - lse).astype(o_ref.dtype)


# ----------------------------------------------------------------------------
# pallas_call wrapper (row-gridded, pipelined A tile, resident x / weights)
# ----------------------------------------------------------------------------
def _sage_layer_call(a_mask, dinv, x_p, wl, wr, b_row, *, tm, final,
                     out_dtype, vmem_limit):
    n_pad = a_mask.shape[0]
    cin_p = x_p.shape[1]
    cout_p = wl.shape[1]
    kernel = functools.partial(
        _sage_final_kernel if final else _sage_hidden_kernel, tm=tm)
    return pl.pallas_call(
        kernel,
        out_shape=jax.ShapeDtypeStruct((n_pad, cout_p), out_dtype),
        grid=(n_pad // tm,),
        in_specs=[
            pl.BlockSpec((tm, n_pad), lambda i: (i, 0)),       # A mask row tile (i8)
            pl.BlockSpec((tm, 1), lambda i: (i, 0)),           # 1/deg rows (f32)
            pl.BlockSpec((n_pad, cin_p), lambda i: (0, 0)),    # x (resident, bf16)
            pl.BlockSpec((cin_p, cout_p), lambda i: (0, 0)),   # W_l (bf16)
            pl.BlockSpec((cin_p, cout_p), lambda i: (0, 0)),   # W_r (bf16)
            pl.BlockSpec((1, cout_p), lambda i: (0, 0)),       # bias row (f32)
        ],
        out_specs=pl.BlockSpec((tm, cout_p), lambda i: (i, 0)),
        compiler_params=pltpu.CompilerParams(
            dimension_semantics=("parallel",),
            vmem_limit_bytes=vmem_limit),
    )(a_mask, dinv, x_p, wl, wr, b_row)


# ----------------------------------------------------------------------------
# One-time preparation (hoisted out of the per-call forward path)
# ----------------------------------------------------------------------------
def sage_plan(n, params):
    """Derive tile size / padded node count / VMEM limit once per model+graph size."""
    convs = params["convs"]
    c_dims = [convs[0][0].shape[0]] + [w_l.shape[1] for (w_l, _, _) in convs]
    max_c_pad = max(_round_up(c, LANE) for c in c_dims)
    vmem_limit, vmem_budget = _vmem_config()
    n_pad0 = _round_up(n, LANE)
    tm = _choose_row_tile(n_pad0, max_c_pad, max_c_pad, vmem_budget)
    n_pad = _round_up(n, tm)
    return {"tm": tm, "n_pad": n_pad, "vmem_limit": vmem_limit}


def prepare_graph(adj, n_pad):
    """Once per graph: pad + store the 0/1 adjacency as int8 and keep the exact
    f32 1/deg mean-aggregation scale separately.  Padded rows/cols are zero, so
    padding never leaks into real rows."""
    deg = jnp.sum(adj, axis=1, keepdims=True)
    dinv = jnp.where(deg > 0, 1.0 / deg, 0.0).astype(jnp.float32)
    a_mask = _pad2((adj != 0).astype(jnp.float32), n_pad, n_pad).astype(_ADJ_DTYPE)
    dinv_p = _pad2(dinv, n_pad, 1)
    return a_mask, dinv_p


def prepare_layers(params):
    """Once per model: fold eval-mode BatchNorm into the SAGEConv weights, pad
    channel dims to 128 lanes, cast weights to bf16, poison the padded logit
    lanes of the final bias with -1e30."""
    convs = params["convs"]
    bns = params["bns"]
    layers = []
    for li, (w_l, w_r, b_l) in enumerate(convs):
        final = li == len(convs) - 1
        cin, c_out = w_l.shape
        cin_p, cout_p = _round_up(cin, LANE), _round_up(c_out, LANE)
        if not final:
            gamma, beta, mean, var = bns[li]
            scale = gamma * jax.lax.rsqrt(var + 1e-5)
            w_l = w_l * scale
            w_r = w_r * scale
            b_row = _pad2((b_l - mean) * scale + beta, 1, cout_p)
        else:
            b_row = _pad2(b_l, 1, cout_p, value=_NEG_INF)
        layers.append((
            _pad2(w_l, cin_p, cout_p).astype(jnp.bfloat16),
            _pad2(w_r, cin_p, cout_p).astype(jnp.bfloat16),
            b_row.astype(jnp.float32),
        ))
    return layers


# ----------------------------------------------------------------------------
# Full SAGE forward (eval mode: dropout is identity)
# ----------------------------------------------------------------------------
@functools.partial(jax.jit, static_argnames=("tm", "vmem_limit", "out_channels"))
def sage_forward(x, a_mask, dinv, layers, *, tm, vmem_limit, out_channels):
    n, cin = x.shape
    n_pad = a_mask.shape[0]
    h = _pad2(x, n_pad, _round_up(cin, LANE)).astype(_ACT_DTYPE)
    num_layers = len(layers)
    for li, (wl, wr, b_row) in enumerate(layers):
        final = li == num_layers - 1
        # TODO(synk): dropout skipped (module evaluated in inference mode).
        h = _sage_layer_call(
            a_mask, dinv, h, wl, wr, b_row, tm=tm, final=final,
            out_dtype=jnp.float32 if final else _ACT_DTYPE,
            vmem_limit=vmem_limit)
    return h[:n, :out_channels]


# ----------------------------------------------------------------------------
# Pure-JAX reference (f32, matches the PyTorch eval-mode forward)
# ----------------------------------------------------------------------------
def sage_reference(x, adj, params):
    convs = params["convs"]
    bns = params["bns"]
    deg = jnp.sum(adj, axis=1, keepdims=True)
    a_norm = adj / jnp.where(deg > 0, deg, 1.0)
    h = x
    for li in range(len(convs) - 1):
        w_l, w_r, b_l = convs[li]
        gamma, beta, mean, var = bns[li]
        h = (a_norm @ h) @ w_l + h @ w_r + b_l
        h = (h - mean) * jax.lax.rsqrt(var + 1e-5) * gamma + beta
        h = jnp.maximum(h, 0.0)
    w_l, w_r, b_l = convs[-1]
    h = (a_norm @ h) @ w_l + h @ w_r + b_l
    return jax.nn.log_softmax(h, axis=-1)


# ----------------------------------------------------------------------------
# Deterministic parameter / input construction (glue, plain JAX)
# ----------------------------------------------------------------------------
def init_sage_params(key, in_channels, hidden_channels, out_channels, num_layers):
    dims = [in_channels] + [hidden_channels] * (num_layers - 1) + [out_channels]
    convs, bns = [], []
    for li in range(num_layers):
        cin, cout = dims[li], dims[li + 1]
        key, k1, k2, k3 = jax.random.split(key, 4)
        w_l = jax.random.normal(k1, (cin, cout), jnp.float32) * 0.1
        w_r = jax.random.normal(k2, (cin, cout), jnp.float32) * 0.1
        b_l = jax.random.normal(k3, (1, cout), jnp.float32) * 0.05
        convs.append((w_l, w_r, b_l))
        if li < num_layers - 1:
            key, k4, k5 = jax.random.split(key, 3)
            gamma = jnp.ones((1, cout), jnp.float32) + \
                0.1 * jax.random.normal(k4, (1, cout), jnp.float32)
            beta = 0.1 * jax.random.normal(k5, (1, cout), jnp.float32)
            run_mean = jnp.zeros((1, cout), jnp.float32)
            run_var = jnp.ones((1, cout), jnp.float32)
            bns.append((gamma, beta, run_mean, run_var))
    return {"convs": convs, "bns": bns}, key


def make_adjacency(key, n, density=0.05):
    """Random undirected 0/1 adjacency, no self-loops."""
    a = (jax.random.uniform(key, (n, n)) < density).astype(jnp.float32)
    a = jnp.maximum(a, a.T)
    return a * (1.0 - jnp.eye(n, dtype=jnp.float32))


# ----------------------------------------------------------------------------
if __name__ == "__main__":
    N = 256            # number of graph nodes
    IN_CH = 16
    HIDDEN = 32
    OUT_CH = 8
    NUM_LAYERS = 3
    DROPOUT = 0.5      # unused in eval mode

    key = jax.random.PRNGKey(0)
    key, kx, ka = jax.random.split(key, 3)

    x = jax.random.normal(kx, (N, IN_CH), jnp.float32)
    adj = make_adjacency(ka, N)
    params, key = init_sage_params(key, IN_CH, HIDDEN, OUT_CH, NUM_LAYERS)

    # One-time prep, hoisted out of the forward path (per perf review).
    plan = sage_plan(N, params)
    a_mask, dinv = jax.block_until_ready(prepare_graph(adj, plan["n_pad"]))
    layers = jax.block_until_ready(prepare_layers(params))

    out = jax.block_until_ready(
        sage_forward(x, a_mask, dinv, layers, tm=plan["tm"],
                     vmem_limit=plan["vmem_limit"], out_channels=OUT_CH))

    assert out.shape == (N, OUT_CH), out.shape
    # log_softmax sanity: each row sums (in prob space) to ~1.
    row_prob_sum = jnp.sum(jnp.exp(out), axis=-1)
    assert jnp.allclose(row_prob_sum, 1.0, atol=1e-3), row_prob_sum
    # Numerical check vs pure-JAX f32 reference (activations / weights are bf16
    # with f32 MXU accumulation; the adjacency mask and 1/deg scale are exact).
    ref = sage_reference(x, adj, params)
    assert jnp.allclose(out, ref, atol=7.5e-2), float(jnp.max(jnp.abs(out - ref)))

    print("KERNEL_OK")
</pallas_src>

<mosaic_0001>
module attributes {stable_mosaic.version = 11 : i64} {
  func.func @_sage_hidden_kernel(%arg0: i32, %arg1: memref<256x256xi8, #tpu.memory_space<vmem>>, %arg2: memref<256x1xf32, #tpu.memory_space<vmem>>, %arg3: memref<256x128xbf16, #tpu.memory_space<vmem>>, %arg4: memref<128x128xbf16, #tpu.memory_space<vmem>>, %arg5: memref<128x128xbf16, #tpu.memory_space<vmem>>, %arg6: memref<1x128xf32, #tpu.memory_space<vmem>>, %arg7: memref<256x128xbf16, #tpu.memory_space<vmem>>) attributes {dimension_semantics = [#tpu.dimension_semantics<parallel>], iteration_bounds = array<i64: 1>, scalar_prefetch = 0 : i64, scratch_operands = 0 : i64, tpu.core_type = #tpu.core_type<tc>, window_params = [{transform_indices = @transform_0, window_bounds = array<i64: 256, 256>}, {transform_indices = @transform_1, window_bounds = array<i64: 256, 1>}, {pipeline_mode = #tpu.pipeline_mode<synchronous>, transform_indices = @transform_2, window_bounds = array<i64: 256, 128>}, {pipeline_mode = #tpu.pipeline_mode<synchronous>, transform_indices = @transform_3, window_bounds = array<i64: 128, 128>}, {pipeline_mode = #tpu.pipeline_mode<synchronous>, transform_indices = @transform_4, window_bounds = array<i64: 128, 128>}, {pipeline_mode = #tpu.pipeline_mode<synchronous>, transform_indices = @transform_5, window_bounds = array<i64: 1, 128>}, {transform_indices = @transform_6, window_bounds = array<i64: 256, 128>}]} {
    %c0 = arith.constant 0 : index
    %c0_0 = arith.constant 0 : index
    %0 = vector.load %arg1[%c0, %c0_0] : memref<256x256xi8, #tpu.memory_space<vmem>>, vector<256x256xi8>
    %1 = arith.sitofp %0 : vector<256x256xi8> to vector<256x256xbf16>
    %c0_1 = arith.constant 0 : index
    %c0_2 = arith.constant 0 : index
    %2 = vector.load %arg3[%c0_1, %c0_2] : memref<256x128xbf16, #tpu.memory_space<vmem>>, vector<256x128xbf16>
    %cst = arith.constant dense<0.000000e+00> : vector<256x128xf32>
    %3 = tpu.matmul %1, %2, %cst {dimension_numbers = #tpu.dot_dimension_numbers<[1], [0], [0], [1], [0, 0, 1, 1], [], []>} : vector<256x256xbf16>, vector<256x128xbf16>, vector<256x128xf32> -> vector<256x128xf32>
    %c0_3 = arith.constant 0 : index
    %c0_4 = arith.constant 0 : index
    %4 = vector.load %arg2[%c0_3, %c0_4] : memref<256x1xf32, #tpu.memory_space<vmem>>, vector<256x1xf32>
    %5 = vector.broadcast %4 : vector<256x1xf32> to vector<256x128xf32>
    %6 = arith.mulf %3, %5 : vector<256x128xf32>
    %c256_i32 = arith.constant 256 : i32
    %7 = arith.muli %arg0, %c256_i32 : i32
    %8 = tpu.assume_multiple %7, 256 : i32
    %9 = arith.index_cast %8 : i32 to index
    %c0_5 = arith.constant 0 : index
    %10 = vector.load %arg3[%9, %c0_5] : memref<256x128xbf16, #tpu.memory_space<vmem>>, vector<256x128xbf16>
    %11 = arith.truncf %6 : vector<256x128xf32> to vector<256x128xbf16>
    %c0_6 = arith.constant 0 : index
    %c0_7 = arith.constant 0 : index
    %12 = vector.load %arg4[%c0_6, %c0_7] : memref<128x128xbf16, #tpu.memory_space<vmem>>, vector<128x128xbf16>
    %cst_8 = arith.constant dense<0.000000e+00> : vector<256x128xf32>
    %13 = tpu.matmul %11, %12, %cst_8 {dimension_numbers = #tpu.dot_dimension_numbers<[1], [0], [0], [1], [0, 0, 1, 1], [], []>} : vector<256x128xbf16>, vector<128x128xbf16>, vector<256x128xf32> -> vector<256x128xf32>
    %c0_9 = arith.constant 0 : index
    %c0_10 = arith.constant 0 : index
    %14 = vector.load %arg5[%c0_9, %c0_10] : memref<128x128xbf16, #tpu.memory_space<vmem>>, vector<128x128xbf16>
    %cst_11 = arith.constant dense<0.000000e+00> : vector<256x128xf32>
    %15 = tpu.matmul %10, %14, %cst_11 {dimension_numbers = #tpu.dot_dimension_numbers<[1], [0], [0], [1], [0, 0, 1, 1], [], []>} : vector<256x128xbf16>, vector<128x128xbf16>, vector<256x128xf32> -> vector<256x128xf32>
    %16 = arith.addf %13, %15 : vector<256x128xf32>
    %c0_12 = arith.constant 0 : index
    %c0_13 = arith.constant 0 : index
    %17 = vector.load %arg6[%c0_12, %c0_13] : memref<1x128xf32, #tpu.memory_space<vmem>>, vector<1x128xf32>
    %18 = vector.broadcast %17 : vector<1x128xf32> to vector<256x128xf32>
    %19 = arith.addf %16, %18 : vector<256x128xf32>
    %cst_14 = arith.constant 0.000000e+00 : f32
    %20 = vector.broadcast %cst_14 : f32 to vector<256x128xf32>
    %21 = arith.maximumf %19, %20 : vector<256x128xf32>
    %22 = arith.truncf %21 : vector<256x128xf32> to vector<256x128xbf16>
    %c0_15 = arith.constant 0 : index
    %c0_16 = arith.constant 0 : index
    %23 = vector.load %arg7[%c0_15, %c0_16] : memref<256x128xbf16, #tpu.memory_space<vmem>>, vector<256x128xbf16>
    tpu.vector_store %arg7[%c0_15, %c0_16], %22 {strides = array<i32>} : memref<256x128xbf16, #tpu.memory_space<vmem>>, vector<256x128xbf16>,
    return
  }
  func.func @transform_0(%arg0: i32) -> (i32, i32) {
    %c0_i32 = arith.constant 0 : i32
    %c0_i32_0 = arith.constant 0 : i32
    return %arg0, %c0_i32 : i32, i32
  }
  func.func @transform_1(%arg0: i32) -> (i32, i32) {
    %c0_i32 = arith.constant 0 : i32
    %c0_i32_0 = arith.constant 0 : i32
    return %arg0, %c0_i32 : i32, i32
  }
  func.func @transform_2(%arg0: i32) -> (i32, i32) {
    %c0_i32 = arith.constant 0 : i32
    %c0_i32_0 = arith.constant 0 : i32
    %c0_i32_1 = arith.constant 0 : i32
    return %c0_i32, %c0_i32_0 : i32, i32
  }
  func.func @transform_3(%arg0: i32) -> (i32, i32) {
    %c0_i32 = arith.constant 0 : i32
    %c0_i32_0 = arith.constant 0 : i32
    %c0_i32_1 = arith.constant 0 : i32
    return %c0_i32, %c0_i32_0 : i32, i32
  }
  func.func @transform_4(%arg0: i32) -> (i32, i32) {
    %c0_i32 = arith.constant 0 : i32
    %c0_i32_0 = arith.constant 0 : i32
    %c0_i32_1 = arith.constant 0 : i32
    return %c0_i32, %c0_i32_0 : i32, i32
  }
  func.func @transform_5(%arg0: i32) -> (i32, i32) {
    %c0_i32 = arith.constant 0 : i32
    %c0_i32_0 = arith.constant 0 : i32
    %c0_i32_1 = arith.constant 0 : i32
    return %c0_i32, %c0_i32_0 : i32, i32
  }
  func.func @transform_6(%arg0: i32) -> (i32, i32) {
    %c0_i32 = arith.constant 0 : i32
    %c0_i32_0 = arith.constant 0 : i32
    return %arg0, %c0_i32 : i32, i32
  }
}

module attributes {stable_mosaic.version = 11 : i64} {
  func.func @_sage_final_kernel(%arg0: i32, %arg1: memref<256x256xi8, #tpu.memory_space<vmem>>, %arg2: memref<256x1xf32, #tpu.memory_space<vmem>>, %arg3: memref<256x128xbf16, #tpu.memory_space<vmem>>, %arg4: memref<128x128xbf16, #tpu.memory_space<vmem>>, %arg5: memref<128x128xbf16, #tpu.memory_space<vmem>>, %arg6: memref<1x128xf32, #tpu.memory_space<vmem>>, %arg7: memref<256x128xf32, #tpu.memory_space<vmem>>) attributes {dimension_semantics = [#tpu.dimension_semantics<parallel>], iteration_bounds = array<i64: 1>, scalar_prefetch = 0 : i64, scratch_operands = 0 : i64, tpu.core_type = #tpu.core_type<tc>, window_params = [{transform_indices = @transform_0, window_bounds = array<i64: 256, 256>}, {transform_indices = @transform_1, window_bounds = array<i64: 256, 1>}, {pipeline_mode = #tpu.pipeline_mode<synchronous>, transform_indices = @transform_2, window_bounds = array<i64: 256, 128>}, {pipeline_mode = #tpu.pipeline_mode<synchronous>, transform_indices = @transform_3, window_bounds = array<i64: 128, 128>}, {pipeline_mode = #tpu.pipeline_mode<synchronous>, transform_indices = @transform_4, window_bounds = array<i64: 128, 128>}, {pipeline_mode = #tpu.pipeline_mode<synchronous>, transform_indices = @transform_5, window_bounds = array<i64: 1, 128>}, {transform_indices = @transform_6, window_bounds = array<i64: 256, 128>}]} {
    %c0 = arith.constant 0 : index
    %c0_0 = arith.constant 0 : index
    %0 = vector.load %arg1[%c0, %c0_0] : memref<256x256xi8, #tpu.memory_space<vmem>>, vector<256x256xi8>
    %1 = arith.sitofp %0 : vector<256x256xi8> to vector<256x256xbf16>
    %c0_1 = arith.constant 0 : index
    %c0_2 = arith.constant 0 : index
    %2 = vector.load %arg3[%c0_1, %c0_2] : memref<256x128xbf16, #tpu.memory_space<vmem>>, vector<256x128xbf16>
    %cst = arith.constant dense<0.000000e+00> : vector<256x128xf32>
    %3 = tpu.matmul %1, %2, %cst {dimension_numbers = #tpu.dot_dimension_numbers<[1], [0], [0], [1], [0, 0, 1, 1], [], []>} : vector<256x256xbf16>, vector<256x128xbf16>, vector<256x128xf32> -> vector<256x128xf32>
    %c0_3 = arith.constant 0 : index
    %c0_4 = arith.constant 0 : index
    %4 = vector.load %arg2[%c0_3, %c0_4] : memref<256x1xf32, #tpu.memory_space<vmem>>, vector<256x1xf32>
    %5 = vector.broadcast %4 : vector<256x1xf32> to vector<256x128xf32>
    %6 = arith.mulf %3, %5 : vector<256x128xf32>
    %c256_i32 = arith.constant 256 : i32
    %7 = arith.muli %arg0, %c256_i32 : i32
    %8 = tpu.assume_multiple %7, 256 : i32
    %9 = arith.index_cast %8 : i32 to index
    %c0_5 = arith.constant 0 : index
    %10 = vector.load %arg3[%9, %c0_5] : memref<256x128xbf16, #tpu.memory_space<vmem>>, vector<256x128xbf16>
    %11 = arith.truncf %6 : vector<256x128xf32> to vector<256x128xbf16>
    %c0_6 = arith.constant 0 : index
    %c0_7 = arith.constant 0 : index
    %12 = vector.load %arg4[%c0_6, %c0_7] : memref<128x128xbf16, #tpu.memory_space<vmem>>, vector<128x128xbf16>
    %cst_8 = arith.constant dense<0.000000e+00> : vector<256x128xf32>
    %13 = tpu.matmul %11, %12, %cst_8 {dimension_numbers = #tpu.dot_dimension_numbers<[1], [0], [0], [1], [0, 0, 1, 1], [], []>} : vector<256x128xbf16>, vector<128x128xbf16>, vector<256x128xf32> -> vector<256x128xf32>
    %c0_9 = arith.constant 0 : index
    %c0_10 = arith.constant 0 : index
    %14 = vector.load %arg5[%c0_9, %c0_10] : memref<128x128xbf16, #tpu.memory_space<vmem>>, vector<128x128xbf16>
    %cst_11 = arith.constant dense<0.000000e+00> : vector<256x128xf32>
    %15 = tpu.matmul %10, %14, %cst_11 {dimension_numbers = #tpu.dot_dimension_numbers<[1], [0], [0], [1], [0, 0, 1, 1], [], []>} : vector<256x128xbf16>, vector<128x128xbf16>, vector<256x128xf32> -> vector<256x128xf32>
    %16 = arith.addf %13, %15 : vector<256x128xf32>
    %c0_12 = arith.constant 0 : index
    %c0_13 = arith.constant 0 : index
    %17 = vector.load %arg6[%c0_12, %c0_13] : memref<1x128xf32, #tpu.memory_space<vmem>>, vector<1x128xf32>
    %18 = vector.broadcast %17 : vector<1x128xf32> to vector<256x128xf32>
    %19 = arith.addf %16, %18 : vector<256x128xf32>
    %cst_14 = arith.constant dense<0xFF800000> : vector<256xf32>
    %20 = vector.multi_reduction <maximumf>, %19, %cst_14 [1] : vector<256x128xf32> to vector<256xf32>
    %21 = vector.shape_cast %20 : vector<256xf32> to vector<256x1xf32>
    %22 = vector.broadcast %21 : vector<256x1xf32> to vector<256x128xf32>
    %23 = arith.subf %19, %22 : vector<256x128xf32>
    %24 = math.exp %23 : vector<256x128xf32>
    %cst_15 = arith.constant dense<0.000000e+00> : vector<256xf32>
    %25 = vector.multi_reduction <add>, %24, %cst_15 [1] : vector<256x128xf32> to vector<256xf32>
    %26 = vector.shape_cast %25 : vector<256xf32> to vector<256x1xf32>
    %27 = math.log %26 : vector<256x1xf32>
    %28 = arith.addf %21, %27 : vector<256x1xf32>
    %29 = vector.broadcast %28 : vector<256x1xf32> to vector<256x128xf32>
    %30 = arith.subf %19, %29 : vector<256x128xf32>
    %c0_16 = arith.constant 0 : index
    %c0_17 = arith.constant 0 : index
    %31 = vector.load %arg7[%c0_16, %c0_17] : memref<256x128xf32, #tpu.memory_space<vmem>>, vector<256x128xf32>
    tpu.vector_store %arg7[%c0_16, %c0_17], %30 {strides = array<i32>} : memref<256x128xf32, #tpu.memory_space<vmem>>, vector<256x128xf32>,
    return
  }
  func.func @transform_0(%arg0: i32) -> (i32, i32) {
    %c0_i32 = arith.constant 0 : i32
    %c0_i32_0 = arith.constant 0 : i32
    return %arg0, %c0_i32 : i32, i32
  }
  func.func @transform_1(%arg0: i32) -> (i32, i32) {
    %c0_i32 = arith.constant 0 : i32
    %c0_i32_0 = arith.constant 0 : i32
    return %arg0, %c0_i32 : i32, i32
  }
  func.func @transform_2(%arg0: i32) -> (i32, i32) {
    %c0_i32 = arith.constant 0 : i32
    %c0_i32_0 = arith.constant 0 : i32
    %c0_i32_1 = arith.constant 0 : i32
    return %c0_i32, %c0_i32_0 : i32, i32
  }
  func.func @transform_3(%arg0: i32) -> (i32, i32) {
    %c0_i32 = arith.constant 0 : i32
    %c0_i32_0 = arith.constant 0 : i32
    %c0_i32_1 = arith.constant 0 : i32
    return %c0_i32, %c0_i32_0 : i32, i32
  }
  func.func @transform_4(%arg0: i32) -> (i32, i32) {
    %c0_i32 = arith.constant 0 : i32
    %c0_i32_0 = arith.constant 0 : i32
    %c0_i32_1 = arith.constant 0 : i32
    return %c0_i32, %c0_i32_0 : i32, i32
  }
  func.func @transform_5(%arg0: i32) -> (i32, i32) {
    %c0_i32 = arith.constant 0 : i32
    %c0_i32_0 = arith.constant 0 : i32
    %c0_i32_1 = arith.constant 0 : i32
    return %c0_i32, %c0_i32_0 : i32, i32
  }
  func.func @transform_6(%arg0: i32) -> (i32, i32) {
    %c0_i32 = arith.constant 0 : i32
    %c0_i32_0 = arith.constant 0 : i32
    return %arg0, %c0_i32 : i32, i32
  }
}

</mosaic_0001>

<llo_original>
// kernel: sage_forward.5
$region0: #{sage_forward.5}
  #allocation0 [shape = 'u32[]', space=smem, size = 0x4, offset = 0x4, fixed_abs, tag = 'smem constant byte address 0x4 - core index']
  #allocation1 [shape = 'u32[144,128]{1,0:T(1,128)}', space=vmem, size = 0x12000, scoped, tag = 'internal scratch']
  %s0 = inlined_call_operand.vmem [shape: s8[256,256], index: 0, kind: input, shape index: {}]
  %s1 = inlined_call_operand.vmem [shape: f32[256,1], index: 1, kind: input, shape index: {}]
  %s2 = inlined_call_operand.vmem [shape: bf16[256,128], index: 2, kind: input, shape index: {}]
  %s3 = inlined_call_operand.vmem [shape: bf16[128,128], index: 3, kind: input, shape index: {}]
  %s4 = inlined_call_operand.vmem [shape: bf16[128,128], index: 4, kind: input, shape index: {}]
  %s5 = inlined_call_operand.vmem [shape: f32[1,128], index: 5, kind: input, shape index: {}]
  %s6 = inlined_call_operand.vmem [shape: f32[256,128], index: 6, kind: output, shape index: {}]
  %s7 = sld [smem:[#allocation0]]
  $region34: #{sage_forward.5} parent=0
    _
  %s9 = ssub.s32 1, %s7
  %s10 = scalar_select 0, %s9, %s7
  // Predicated region
  $region2: #{sage_forward.5} parent=0 // pred_check
    _
  $region3: #{sage_forward.5} parent=0 // pred_check_branch
    %12 = sbr.rel (0) target = $region5
  $region4: #{sage_forward.5} parent=0 // pred_region
    _
  $region5: #{sage_forward.5} parent=0 // pred_fallthru
    _
  // Predicated region
  $region6: #{sage_forward.5} parent=0 // pred_check
    _
  $region7: #{sage_forward.5} parent=0 // pred_check_branch
    %14 = sbr.rel (0) target = $region9
  $region8: #{sage_forward.5} parent=0 // pred_region
    _
  $region9: #{sage_forward.5} parent=0 // pred_fallthru
    _
  // Predicated region
  $region10: #{sage_forward.5} parent=0 // pred_check
    _
  $region11: #{sage_forward.5} parent=0 // pred_check_branch
    %16 = sbr.rel (0) target = $region13
  $region12: #{sage_forward.5} parent=0 // pred_region
    _
  $region13: #{sage_forward.5} parent=0 // pred_fallthru
    _
  // Predicated region
  $region14: #{sage_forward.5} parent=0 // pred_check
    _
  $region15: #{sage_forward.5} parent=0 // pred_check_branch
    %18 = sbr.rel (0) target = $region17
  $region16: #{sage_forward.5} parent=0 // pred_region
    _
  $region17: #{sage_forward.5} parent=0 // pred_fallthru
    _
  // Predicated region
  $region18: #{sage_forward.5} parent=0 // pred_check
    _
  $region19: #{sage_forward.5} parent=0 // pred_check_branch
    %20 = sbr.rel (0) target = $region21
  $region20: #{sage_forward.5} parent=0 // pred_region
    _
  $region21: #{sage_forward.5} parent=0 // pred_fallthru
    _
  // Predicated region
  $region22: #{sage_forward.5} parent=0 // pred_check
    _
  $region23: #{sage_forward.5} parent=0 // pred_check_branch
    %22 = sbr.rel (0) target = $region25
  $region24: #{sage_forward.5} parent=0 // pred_region
    _
  $region25: #{sage_forward.5} parent=0 // pred_fallthru
    _
  %v24 = vld [vmem:[%s0] sm:$0xff]
  %v25 = vld [vmem:[%s0 + $0x8] sm:$0xff]
  %v26 = vld [vmem:[%s0 + $0x10] sm:$0xff]
  %v27 = vld [vmem:[%s0 + $0x18] sm:$0xff]
  %v28 = vld [vmem:[%s0 + $0x20] sm:$0xff]
  %v29 = vld [vmem:[%s0 + $0x28] sm:$0xff]
  %v30 = vld [vmem:[%s0 + $0x30] sm:$0xff]
  %v31 = vld [vmem:[%s0 + $0x38] sm:$0xff]
  %v32 = vld [vmem:[%s0 + $0x40] sm:$0xff]
  %v33 = vld [vmem:[%s0 + $0x48] sm:$0xff]
  %v34 = vld [vmem:[%s0 + $0x50] sm:$0xff]
  %v35 = vld [vmem:[%s0 + $0x58] sm:$0xff]
  %v36 = vld [vmem:[%s0 + $0x60] sm:$0xff]
  %v37 = vld [vmem:[%s0 + $0x68] sm:$0xff]
  %v38 = vld [vmem:[%s0 + $0x70] sm:$0xff]
  %v39 = vld [vmem:[%s0 + $0x78] sm:$0xff]
  %v40 = vunpack.c.l.s8.bf16 %v24
  %v41 = vunpack.c.l.s8.bf16 %v25
  %v42 = vunpack.c.h.s8.bf16 %v24
  %v43 = vunpack.c.h.s8.bf16 %v25
  %v44 = vunpack.c.l.s8.bf16 %v26
  %v45 = vunpack.c.l.s8.bf16 %v27
  %v46 = vunpack.c.h.s8.bf16 %v26
  %v47 = vunpack.c.h.s8.bf16 %v27
  %v48 = vunpack.c.l.s8.bf16 %v28
  %v49 = vunpack.c.l.s8.bf16 %v29
  %v50 = vunpack.c.h.s8.bf16 %v28
  %v51 = vunpack.c.h.s8.bf16 %v29
  %v52 = vunpack.c.l.s8.bf16 %v30
  %v53 = vunpack.c.l.s8.bf16 %v31
  %v54 = vunpack.c.h.s8.bf16 %v30
  %v55 = vunpack.c.h.s8.bf16 %v31
  %v56 = vunpack.c.l.s8.bf16 %v32
  %v57 = vunpack.c.l.s8.bf16 %v33
  %v58 = vunpack.c.h.s8.bf16 %v32
  %v59 = vunpack.c.h.s8.bf16 %v33
  %v60 = vunpack.c.l.s8.bf16 %v34
  %v61 = vunpack.c.l.s8.bf16 %v35
  %v62 = vunpack.c.h.s8.bf16 %v34
  %v63 = vunpack.c.h.s8.bf16 %v35
  %v64 = vunpack.c.l.s8.bf16 %v36
  %v65 = vunpack.c.l.s8.bf16 %v37
  %v66 = vunpack.c.h.s8.bf16 %v36
  %v67 = vunpack.c.h.s8.bf16 %v37
  %v68 = vunpack.c.l.s8.bf16 %v38
  %v69 = vunpack.c.l.s8.bf16 %v39
  %v70 = vunpack.c.h.s8.bf16 %v38
  %v71 = vunpack.c.h.s8.bf16 %v39
  %v72 = vld [vmem:[%s2] sm:$0xf]
  %v73 = vld [vmem:[%s2 + $0x4] sm:$0xf]
  %v74 = vld [vmem:[%s2 + $0x8] sm:$0xf]
  %v75 = vld [vmem:[%s2 + $0xc] sm:$0xf]
  %v76 = vld [vmem:[%s2 + $0x10] sm:$0xf]
  %v77 = vld [vmem:[%s2 + $0x14] sm:$0xf]
  %v78 = vld [vmem:[%s2 + $0x18] sm:$0xf]
  %v79 = vld [vmem:[%s2 + $0x1c] sm:$0xf]
  %v80 = vld [vmem:[%s2 + $0x20] sm:$0xf]
  %v81 = vld [vmem:[%s2 + $0x24] sm:$0xf]
  %v82 = vld [vmem:[%s2 + $0x28] sm:$0xf]
  %v83 = vld [vmem:[%s2 + $0x2c] sm:$0xf]
  %v84 = vld [vmem:[%s2 + $0x30] sm:$0xf]
  %v85 = vld [vmem:[%s2 + $0x34] sm:$0xf]
  %v86 = vld [vmem:[%s2 + $0x38] sm:$0xf]
  %v87 = vld [vmem:[%s2 + $0x3c] sm:$0xf]
  %v88 = vld [vmem:[%s2 + $0x40] sm:$0xf]
  %v89 = vld [vmem:[%s2 + $0x44] sm:$0xf]
  %v90 = vld [vmem:[%s2 + $0x48] sm:$0xf]
  %v91 = vld [vmem:[%s2 + $0x4c] sm:$0xf]
  %v92 = vld [vmem:[%s2 + $0x50] sm:$0xf]
  %v93 = vld [vmem:[%s2 + $0x54] sm:$0xf]
  %v94 = vld [vmem:[%s2 + $0x58] sm:$0xf]
  %v95 = vld [vmem:[%s2 + $0x5c] sm:$0xf]
  %v96 = vld [vmem:[%s2 + $0x60] sm:$0xf]
  %v97 = vld [vmem:[%s2 + $0x64] sm:$0xf]
  %v98 = vld [vmem:[%s2 + $0x68] sm:$0xf]
  %v99 = vld [vmem:[%s2 + $0x6c] sm:$0xf]
  %v100 = vld [vmem:[%s2 + $0x70] sm:$0xf]
  %v101 = vld [vmem:[%s2 + $0x74] sm:$0xf]
  %v102 = vld [vmem:[%s2 + $0x78] sm:$0xf]
  %v103 = vld [vmem:[%s2 + $0x7c] sm:$0xf]
  %v136 = vunpack.c.l.b16 %v72
  %v137 = vunpack.c.l.b16 %v73
  %v138 = vunpack.c.l.b16 %v74
  %v139 = vunpack.c.l.b16 %v75
  %v140 = vunpack.c.l.b16 %v76
  %v141 = vunpack.c.l.b16 %v77
  %v142 = vunpack.c.l.b16 %v78
  %v143 = vunpack.c.l.b16 %v79
  %v144 = vunpack.c.l.b16 %v80
  %v145 = vunpack.c.l.b16 %v81
  %v146 = vunpack.c.l.b16 %v82
  %v147 = vunpack.c.l.b16 %v83
  %v148 = vunpack.c.l.b16 %v84
  %v149 = vunpack.c.l.b16 %v85
  %v150 = vunpack.c.l.b16 %v86
  %v151 = vunpack.c.l.b16 %v87
  %v152 = vunpack.c.l.b16 %v88
  %v153 = vunpack.c.l.b16 %v89
  %v154 = vunpack.c.l.b16 %v90
  %v155 = vunpack.c.l.b16 %v91
  %v156 = vunpack.c.l.b16 %v92
  %v157 = vunpack.c.l.b16 %v93
  %v158 = vunpack.c.l.b16 %v94
  %v159 = vunpack.c.l.b16 %v95
  %v160 = vunpack.c.l.b16 %v96
  %v161 = vunpack.c.l.b16 %v97
  %v162 = vunpack.c.l.b16 %v98
  %v163 = vunpack.c.l.b16 %v99
  %v164 = vunpack.c.l.b16 %v100
  %v165 = vunpack.c.l.b16 %v101
  %v166 = vunpack.c.l.b16 %v102
  %v167 = vunpack.c.l.b16 %v103
  %v168 = vpack.c.b16 %v137, %v136
  %v169 = vpack.c.b16 %v139, %v138
  %v170 = vpack.c.b16 %v141, %v140
  %v171 = vpack.c.b16 %v143, %v142
  %v172 = vpack.c.b16 %v145, %v144
  %v173 = vpack.c.b16 %v147, %v146
  %v174 = vpack.c.b16 %v149, %v148
  %v175 = vpack.c.b16 %v151, %v150
  %v176 = vpack.c.b16 %v153, %v152
  %v177 = vpack.c.b16 %v155, %v154
  %v178 = vpack.c.b16 %v157, %v156
  %v179 = vpack.c.b16 %v159, %v158
  %v180 = vpack.c.b16 %v161, %v160
  %v181 = vpack.c.b16 %v163, %v162
  %v182 = vpack.c.b16 %v165, %v164
  %v183 = vpack.c.b16 %v167, %v166
  %200 = vmatprep.subr.bf16.mxu0 0
  %201 = vmatpush1.bf16.msra.mxu0 %v175
  %202 = vmatprep.subr.bf16.mxu0 0
  %203 = vmatpush1.bf16.msra.mxu0 %v174
  %204 = vmatprep.subr.bf16.mxu0 0
  %205 = vmatpush1.bf16.msra.mxu0 %v173
  %206 = vmatprep.subr.bf16.mxu0 0
  %207 = vmatpush1.bf16.msra.mxu0 %v172
  %208 = vmatprep.subr.bf16.mxu0 0
  %209 = vmatpush1.bf16.msra.mxu0 %v171
  %210 = vmatprep.subr.bf16.mxu0 0
  %211 = vmatpush1.bf16.msra.mxu0 %v170
  %212 = vmatprep.subr.bf16.mxu0 0
  %213 = vmatpush1.bf16.msra.mxu0 %v169
  %214 = vmatprep.subr.bf16.mxu0 0
  %215 = vmatpush1.bf16.msra.mxu0 %v168
  %216 = vmatprep.subr.bf16.mxu0 0
  %217 = vmatpush2.bf16.msra.mxu0 %v183
  %218 = vmatprep.subr.bf16.mxu0 0
  %219 = vmatpush2.bf16.msra.mxu0 %v182
  %220 = vmatprep.subr.bf16.mxu0 0
  %221 = vmatpush2.bf16.msra.mxu0 %v181
  %222 = vmatprep.subr.bf16.mxu0 0
  %223 = vmatpush2.bf16.msra.mxu0 %v180
  %224 = vmatprep.subr.bf16.mxu0 0
  %225 = vmatpush2.bf16.msra.mxu0 %v179
  %226 = vmatprep.subr.bf16.mxu0 0
  %227 = vmatpush2.bf16.msra.mxu0 %v178
  %228 = vmatprep.subr.bf16.mxu0 0
  %229 = vmatpush2.bf16.msra.mxu0 %v177
  %230 = vmatprep.subr.bf16.mxu0 0
  %231 = vmatpush2.bf16.msra.mxu0 %v176
  %232 = vmatprep.mubr.bf16.mxu0 %v41
  %233 = vmatmul.mubr.bf16.gmra.mxu0 %v40
  %v234 = vpop.f32.mrf.mxu0
  %v235 = vadd.f32 0.0, %v234
  %v236 = vpop.f32.mrf.mxu0
  %v237 = vpop.f32.mrf.mxu0
  %v238 = vadd.f32 0.0, %v237
  %v239 = vpop.f32.mrf.mxu0
  %240 = vmatprep.mubr.bf16.mxu0 %v43
  %241 = vmatmul.mubr.bf16.gmra.mxu0 %v42
  %v242 = vpop.f32.mrf.mxu0
  %v243 = vadd.f32 0.0, %v242
  %v244 = vpop.f32.mrf.mxu0
  %v245 = vpop.f32.mrf.mxu0
  %v246 = vadd.f32 0.0, %v245
  %v247 = vpop.f32.mrf.mxu0
  %248 = vmatprep.mubr.bf16.mxu0 %v45
  %249 = vmatmul.mubr.bf16.gmra.mxu0 %v44
  %v250 = vpop.f32.mrf.mxu0
  %v251 = vadd.f32 0.0, %v250
  %v252 = vpop.f32.mrf.mxu0
  %v253 = vpop.f32.mrf.mxu0
  %v254 = vadd.f32 0.0, %v253
  %v255 = vpop.f32.mrf.mxu0
  %256 = vmatprep.mubr.bf16.mxu0 %v47
  %257 = vmatmul.mubr.bf16.gmra.mxu0 %v46
  %v258 = vpop.f32.mrf.mxu0
  %v259 = vadd.f32 0.0, %v258
  %v260 = vpop.f32.mrf.mxu0
  %v261 = vpop.f32.mrf.mxu0
  %v262 = vadd.f32 0.0, %v261
  %v263 = vpop.f32.mrf.mxu0
  %264 = vmatprep.mubr.bf16.mxu0 %v49
  %265 = vmatmul.mubr.bf16.gmra.mxu0 %v48
  %v266 = vpop.f32.mrf.mxu0
  %v267 = vadd.f32 0.0, %v266
  %v268 = vpop.f32.mrf.mxu0
  %v269 = vpop.f32.mrf.mxu0
  %v270 = vadd.f32 0.0, %v269
  %v271 = vpop.f32.mrf.mxu0
  %272 = vmatprep.mubr.bf16.mxu0 %v51
  %273 = vmatmul.mubr.bf16.gmra.mxu0 %v50
  %v274 = vpop.f32.mrf.mxu0
  %v275 = vadd.f32 0.0, %v274
  %v276 = vpop.f32.mrf.mxu0
  %v277 = vpop.f32.mrf.mxu0
  %v278 = vadd.f32 0.0, %v277
  %v279 = vpop.f32.mrf.mxu0
  %280 = vmatprep.mubr.bf16.mxu0 %v53
  %281 = vmatmul.mubr.bf16.gmra.mxu0 %v52
  %v282 = vpop.f32.mrf.mxu0
  %v283 = vadd.f32 0.0, %v282
  %v284 = vpop.f32.mrf.mxu0
  %v285 = vpop.f32.mrf.mxu0
  %v286 = vadd.f32 0.0, %v285
  %v287 = vpop.f32.mrf.mxu0
  %288 = vmatprep.mubr.bf16.mxu0 %v55
  %289 = vmatmul.mubr.bf16.gmra.mxu0 %v54
  %v290 = vpop.f32.mrf.mxu0
  %v291 = vadd.f32 0.0, %v290
  %v292 = vpop.f32.mrf.mxu0
  %v293 = vpop.f32.mrf.mxu0
  %v294 = vadd.f32 0.0, %v293
  %v295 = vpop.f32.mrf.mxu0
  %296 = vmatprep.mubr.bf16.mxu0 %v57
  %297 = vmatmul.mubr.bf16.gmra.mxu0 %v56
  %v298 = vpop.f32.mrf.mxu0
  %v299 = vadd.f32 0.0, %v298
  %v300 = vpop.f32.mrf.mxu0
  %v301 = vpop.f32.mrf.mxu0
  %v302 = vadd.f32 0.0, %v301
  %v303 = vpop.f32.mrf.mxu0
  %304 = vmatprep.mubr.bf16.mxu0 %v59
  %305 = vmatmul.mubr.bf16.gmra.mxu0 %v58
  %v306 = vpop.f32.mrf.mxu0
  %v307 = vadd.f32 0.0, %v306
  %v308 = vpop.f32.mrf.mxu0
  %v309 = vpop.f32.mrf.mxu0
  %v310 = vadd.f32 0.0, %v309
  %v311 = vpop.f32.mrf.mxu0
  %312 = vmatprep.mubr.bf16.mxu0 %v61
  %313 = vmatmul.mubr.bf16.gmra.mxu0 %v60
  %v314 = vpop.f32.mrf.mxu0
  %v315 = vadd.f32 0.0, %v314
  %v316 = vpop.f32.mrf.mxu0
  %v317 = vpop.f32.mrf.mxu0
  %v318 = vadd.f32 0.0, %v317
  %v319 = vpop.f32.mrf.mxu0
  %320 = vmatprep.mubr.bf16.mxu0 %v63
  %321 = vmatmul.mubr.bf16.gmra.mxu0 %v62
  %v322 = vpop.f32.mrf.mxu0
  %v323 = vadd.f32 0.0, %v322
  %v324 = vpop.f32.mrf.mxu0
  %v325 = vpop.f32.mrf.mxu0
  %v326 = vadd.f32 0.0, %v325
  %v327 = vpop.f32.mrf.mxu0
  %328 = vmatprep.mubr.bf16.mxu0 %v65
  %329 = vmatmul.mubr.bf16.gmra.mxu0 %v64
  %v330 = vpop.f32.mrf.mxu0
  %v331 = vadd.f32 0.0, %v330
  %v332 = vpop.f32.mrf.mxu0
  %v333 = vpop.f32.mrf.mxu0
  %v334 = vadd.f32 0.0, %v333
  %v335 = vpop.f32.mrf.mxu0
  %336 = vmatprep.mubr.bf16.mxu0 %v67
  %337 = vmatmul.mubr.bf16.gmra.mxu0 %v66
  %v338 = vpop.f32.mrf.mxu0
  %v339 = vadd.f32 0.0, %v338
  %v340 = vpop.f32.mrf.mxu0
  %v341 = vpop.f32.mrf.mxu0
  %v342 = vadd.f32 0.0, %v341
  %v343 = vpop.f32.mrf.mxu0
  %344 = vmatprep.mubr.bf16.mxu0 %v69
  %345 = vmatmul.mubr.bf16.gmra.mxu0 %v68
  %v346 = vpop.f32.mrf.mxu0
  %v347 = vadd.f32 0.0, %v346
  %v348 = vpop.f32.mrf.mxu0
  %v349 = vpop.f32.mrf.mxu0
  %v350 = vadd.f32 0.0, %v349
  %v351 = vpop.f32.mrf.mxu0
  %352 = vmatprep.mubr.bf16.mxu0 %v71
  %353 = vmatmul.mubr.bf16.gmra.mxu0 %v70
  %v354 = vpop.f32.mrf.mxu0
  %v355 = vadd.f32 0.0, %v354
  %v356 = vpop.f32.mrf.mxu0
  %v357 = vpop.f32.mrf.mxu0
  %v358 = vadd.f32 0.0, %v357
  %v359 = vpop.f32.mrf.mxu0
  %360 = vdwg.mxu0
  %v361 = vld [vmem:[%s1] sm:$0xff]
  %v362 = vld [vmem:[%s1 + $0x8] sm:$0xff]
  %v363 = vld [vmem:[%s1 + $0x10] sm:$0xff]
  %v364 = vld [vmem:[%s1 + $0x18] sm:$0xff]
  %v365 = vld [vmem:[%s1 + $0x20] sm:$0xff]
  %v366 = vld [vmem:[%s1 + $0x28] sm:$0xff]
  %v367 = vld [vmem:[%s1 + $0x30] sm:$0xff]
  %v368 = vld [vmem:[%s1 + $0x38] sm:$0xff]
  %v369 = vld [vmem:[%s1 + $0x40] sm:$0xff]
  %v370 = vld [vmem:[%s1 + $0x48] sm:$0xff]
  %v371 = vld [vmem:[%s1 + $0x50] sm:$0xff]
  %v372 = vld [vmem:[%s1 + $0x58] sm:$0xff]
  %v373 = vld [vmem:[%s1 + $0x60] sm:$0xff]
  %v374 = vld [vmem:[%s1 + $0x68] sm:$0xff]
  %v375 = vld [vmem:[%s1 + $0x70] sm:$0xff]
  %v376 = vld [vmem:[%s1 + $0x78] sm:$0xff]
  %v377 = vld [vmem:[%s1 + $0x80] sm:$0xff]
  %v378 = vld [vmem:[%s1 + $0x88] sm:$0xff]
  %v379 = vld [vmem:[%s1 + $0x90] sm:$0xff]
  %v380 = vld [vmem:[%s1 + $0x98] sm:$0xff]
  %v381 = vld [vmem:[%s1 + $0xa0] sm:$0xff]
  %v382 = vld [vmem:[%s1 + $0xa8] sm:$0xff]
  %v383 = vld [vmem:[%s1 + $0xb0] sm:$0xff]
  %v384 = vld [vmem:[%s1 + $0xb8] sm:$0xff]
  %v385 = vld [vmem:[%s1 + $0xc0] sm:$0xff]
  %v386 = vld [vmem:[%s1 + $0xc8] sm:$0xff]
  %v387 = vld [vmem:[%s1 + $0xd0] sm:$0xff]
  %v388 = vld [vmem:[%s1 + $0xd8] sm:$0xff]
  %v389 = vld [vmem:[%s1 + $0xe0] sm:$0xff]
  %v390 = vld [vmem:[%s1 + $0xe8] sm:$0xff]
  %v391 = vld [vmem:[%s1 + $0xf0] sm:$0xff]
  %v392 = vld [vmem:[%s1 + $0xf8] sm:$0xff]
  %394 = vset.pattern.permute.xlu0 0
  %395 = vperm.xlu0 %394, %v361
  %v396 = vpop.permute.xlu0 %395
  %399 = vset.pattern.permute.xlu0 0
  %400 = vperm.xlu0 %399, %v362
  %v401 = vpop.permute.xlu0 %400
  %404 = vset.pattern.permute.xlu0 0
  %405 = vperm.xlu0 %404, %v363
  %v406 = vpop.permute.xlu0 %405
  %409 = vset.pattern.permute.xlu0 0
  %410 = vperm.xlu0 %409, %v364
  %v411 = vpop.permute.xlu0 %410
  %414 = vset.pattern.permute.xlu0 0
  %415 = vperm.xlu0 %414, %v365
  %v416 = vpop.permute.xlu0 %415
  %419 = vset.pattern.permute.xlu0 0
  %420 = vperm.xlu0 %419, %v366
  %v421 = vpop.permute.xlu0 %420
  %424 = vset.pattern.permute.xlu0 0
  %425 = vperm.xlu0 %424, %v367
  %v426 = vpop.permute.xlu0 %425
  %429 = vset.pattern.permute.xlu0 0
  %430 = vperm.xlu0 %429, %v368
  %v431 = vpop.permute.xlu0 %430
  %434 = vset.pattern.permute.xlu0 0
  %435 = vperm.xlu0 %434, %v369
  %v436 = vpop.permute.xlu0 %435
  %439 = vset.pattern.permute.xlu0 0
  %440 = vperm.xlu0 %439, %v370
  %v441 = vpop.permute.xlu0 %440
  %444 = vset.pattern.permute.xlu0 0
  %445 = vperm.xlu0 %444, %v371
  %v446 = vpop.permute.xlu0 %445
  %449 = vset.pattern.permute.xlu0 0
  %450 = vperm.xlu0 %449, %v372
  %v451 = vpop.permute.xlu0 %450
  %454 = vset.pattern.permute.xlu0 0
  %455 = vperm.xlu0 %454, %v373
  %v456 = vpop.permute.xlu0 %455
  %459 = vset.pattern.permute.xlu0 0
  %460 = vperm.xlu0 %459, %v374
  %v461 = vpop.permute.xlu0 %460
  %464 = vset.pattern.permute.xlu0 0
  %465 = vperm.xlu0 %464, %v375
  %v466 = vpop.permute.xlu0 %465
  %469 = vset.pattern.permute.xlu0 0
  %470 = vperm.xlu0 %469, %v376
  %v471 = vpop.permute.xlu0 %470
  %474 = vset.pattern.permute.xlu0 0
  %475 = vperm.xlu0 %474, %v377
  %v476 = vpop.permute.xlu0 %475
  %479 = vset.pattern.permute.xlu0 0
  %480 = vperm.xlu0 %479, %v378
  %v481 = vpop.permute.xlu0 %480
  %484 = vset.pattern.permute.xlu0 0
  %485 = vperm.xlu0 %484, %v379
  %v486 = vpop.permute.xlu0 %485
  %489 = vset.pattern.permute.xlu0 0
  %490 = vperm.xlu0 %489, %v380
  %v491 = vpop.permute.xlu0 %490
  %494 = vset.pattern.permute.xlu0 0
  %495 = vperm.xlu0 %494, %v381
  %v496 = vpop.permute.xlu0 %495
  %499 = vset.pattern.permute.xlu0 0
  %500 = vperm.xlu0 %499, %v382
  %v501 = vpop.permute.xlu0 %500
  %504 = vset.pattern.permute.xlu0 0
  %505 = vperm.xlu0 %504, %v383
  %v506 = vpop.permute.xlu0 %505
  %509 = vset.pattern.permute.xlu0 0
  %510 = vperm.xlu0 %509, %v384
  %v511 = vpop.permute.xlu0 %510
  %514 = vset.pattern.permute.xlu0 0
  %515 = vperm.xlu0 %514, %v385
  %v516 = vpop.permute.xlu0 %515
  %519 = vset.pattern.permute.xlu0 0
  %520 = vperm.xlu0 %519, %v386
  %v521 = vpop.permute.xlu0 %520
  %524 = vset.pattern.permute.xlu0 0
  %525 = vperm.xlu0 %524, %v387
  %v526 = vpop.permute.xlu0 %525
  %529 = vset.pattern.permute.xlu0 0
  %530 = vperm.xlu0 %529, %v388
  %v531 = vpop.permute.xlu0 %530
  %534 = vset.pattern.permute.xlu0 0
  %535 = vperm.xlu0 %534, %v389
  %v536 = vpop.permute.xlu0 %535
  %539 = vset.pattern.permute.xlu0 0
  %540 = vperm.xlu0 %539, %v390
  %v541 = vpop.permute.xlu0 %540
  %544 = vset.pattern.permute.xlu0 0
  %545 = vperm.xlu0 %544, %v391
  %v546 = vpop.permute.xlu0 %545
  %549 = vset.pattern.permute.xlu0 0
  %550 = vperm.xlu0 %549, %v392
  %v551 = vpop.permute.xlu0 %550
  %v553 = vmul.f32 %v235, %v396
  %v554 = vmul.f32 %v238, %v401
  %v555 = vmul.f32 %v243, %v406
  %v556 = vmul.f32 %v246, %v411
  %v557 = vmul.f32 %v251, %v416
  %v558 = vmul.f32 %v254, %v421
  %v559 = vmul.f32 %v259, %v426
  %v560 = vmul.f32 %v262, %v431
  %v561 = vmul.f32 %v267, %v436
  %v562 = vmul.f32 %v270, %v441
  %v563 = vmul.f32 %v275, %v446
  %v564 = vmul.f32 %v278, %v451
  %v565 = vmul.f32 %v283, %v456
  %v566 = vmul.f32 %v286, %v461
  %v567 = vmul.f32 %v291, %v466
  %v568 = vmul.f32 %v294, %v471
  %v569 = vmul.f32 %v299, %v476
  %v570 = vmul.f32 %v302, %v481
  %v571 = vmul.f32 %v307, %v486
  %v572 = vmul.f32 %v310, %v491
  %v573 = vmul.f32 %v315, %v496
  %v574 = vmul.f32 %v318, %v501
  %v575 = vmul.f32 %v323, %v506
  %v576 = vmul.f32 %v326, %v511
  %v577 = vmul.f32 %v331, %v516
  %v578 = vmul.f32 %v334, %v521
  %v579 = vmul.f32 %v339, %v526
  %v580 = vmul.f32 %v342, %v531
  %v581 = vmul.f32 %v347, %v536
  %v582 = vmul.f32 %v350, %v541
  %v583 = vmul.f32 %v355, %v546
  %v584 = vmul.f32 %v358, %v551
  %s585 = smul.u32 0, 256
  %s586 = sshra.s32 %s585, 3
  %s587 = sand.u32 %s585, 7
  %s588 = smul.addr %s586, 4
  %s589 = scalar_lea.vmem %s2, %s588
  %v590 = vld [vmem:[%s589] sm:$0xf]
  %v591 = vld [vmem:[%s589 + $0x4] sm:$0xf]
  %v592 = vld [vmem:[%s589 + $0x8] sm:$0xf]
  %v593 = vld [vmem:[%s589 + $0xc] sm:$0xf]
  %v594 = vld [vmem:[%s589 + $0x10] sm:$0xf]
  %v595 = vld [vmem:[%s589 + $0x14] sm:$0xf]
  %v596 = vld [vmem:[%s589 + $0x18] sm:$0xf]
  %v597 = vld [vmem:[%s589 + $0x1c] sm:$0xf]
  %v598 = vld [vmem:[%s589 + $0x20] sm:$0xf]
  %v599 = vld [vmem:[%s589 + $0x24] sm:$0xf]
  %v600 = vld [vmem:[%s589 + $0x28] sm:$0xf]
  %v601 = vld [vmem:[%s589 + $0x2c] sm:$0xf]
  %v602 = vld [vmem:[%s589 + $0x30] sm:$0xf]
  %v603 = vld [vmem:[%s589 + $0x34] sm:$0xf]
  %v604 = vld [vmem:[%s589 + $0x38] sm:$0xf]
  %v605 = vld [vmem:[%s589 + $0x3c] sm:$0xf]
  %v606 = vld [vmem:[%s589 + $0x40] sm:$0xf]
  %v607 = vld [vmem:[%s589 + $0x44] sm:$0xf]
  %v608 = vld [vmem:[%s589 + $0x48] sm:$0xf]
  %v609 = vld [vmem:[%s589 + $0x4c] sm:$0xf]
  %v610 = vld [vmem:[%s589 + $0x50] sm:$0xf]
  %v611 = vld [vmem:[%s589 + $0x54] sm:$0xf]
  %v612 = vld [vmem:[%s589 + $0x58] sm:$0xf]
  %v613 = vld [vmem:[%s589 + $0x5c] sm:$0xf]
  %v614 = vld [vmem:[%s589 + $0x60] sm:$0xf]
  %v615 = vld [vmem:[%s589 + $0x64] sm:$0xf]
  %v616 = vld [vmem:[%s589 + $0x68] sm:$0xf]
  %v617 = vld [vmem:[%s589 + $0x6c] sm:$0xf]
  %v618 = vld [vmem:[%s589 + $0x70] sm:$0xf]
  %v619 = vld [vmem:[%s589 + $0x74] sm:$0xf]
  %v620 = vld [vmem:[%s589 + $0x78] sm:$0xf]
  %v621 = vld [vmem:[%s589 + $0x7c] sm:$0xf]
  %v622 = vpack.c.bf16 %v554, %v553
  %v623 = vpack.c.bf16 %v556, %v555
  %v624 = vpack.c.bf16 %v558, %v557
  %v625 = vpack.c.bf16 %v560, %v559
  %v626 = vpack.c.bf16 %v562, %v561
  %v627 = vpack.c.bf16 %v564, %v563
  %v628 = vpack.c.bf16 %v566, %v565
  %v629 = vpack.c.bf16 %v568, %v567
  %v630 = vpack.c.bf16 %v570, %v569
  %v631 = vpack.c.bf16 %v572, %v571
  %v632 = vpack.c.bf16 %v574, %v573
  %v633 = vpack.c.bf16 %v576, %v575
  %v634 = vpack.c.bf16 %v578, %v577
  %v635 = vpack.c.bf16 %v580, %v579
  %v636 = vpack.c.bf16 %v582, %v581
  %v637 = vpack.c.bf16 %v584, %v583
  %v638 = vld [vmem:[%s3] sm:$0xf]
  %v639 = vld [vmem:[%s3 + $0x4] sm:$0xf]
  %v640 = vld [vmem:[%s3 + $0x8] sm:$0xf]
  %v641 = vld [vmem:[%s3 + $0xc] sm:$0xf]
  %v642 = vld [vmem:[%s3 + $0x10] sm:$0xf]
  %v643 = vld [vmem:[%s3 + $0x14] sm:$0xf]
  %v644 = vld [vmem:[%s3 + $0x18] sm:$0xf]
  %v645 = vld [vmem:[%s3 + $0x1c] sm:$0xf]
  %v646 = vld [vmem:[%s3 + $0x20] sm:$0xf]
  %v647 = vld [vmem:[%s3 + $0x24] sm:$0xf]
  %v648 = vld [vmem:[%s3 + $0x28] sm:$0xf]
  %v649 = vld [vmem:[%s3 + $0x2c] sm:$0xf]
  %v650 = vld [vmem:[%s3 + $0x30] sm:$0xf]
  %v651 = vld [vmem:[%s3 + $0x34] sm:$0xf]
  %v652 = vld [vmem:[%s3 + $0x38] sm:$0xf]
  %v653 = vld [vmem:[%s3 + $0x3c] sm:$0xf]
  %v654 = vld [vmem:[%s4] sm:$0xf]
  %v655 = vld [vmem:[%s4 + $0x4] sm:$0xf]
  %v656 = vld [vmem:[%s4 + $0x8] sm:$0xf]
  %v657 = vld [vmem:[%s4 + $0xc] sm:$0xf]
  %v658 = vld [vmem:[%s4 + $0x10] sm:$0xf]
  %v659 = vld [vmem:[%s4 + $0x14] sm:$0xf]
  %v660 = vld [vmem:[%s4 + $0x18] sm:$0xf]
  %v661 = vld [vmem:[%s4 + $0x1c] sm:$0xf]
  %v662 = vld [vmem:[%s4 + $0x20] sm:$0xf]
  %v663 = vld [vmem:[%s4 + $0x24] sm:$0xf]
  %v664 = vld [vmem:[%s4 + $0x28] sm:$0xf]
  %v665 = vld [vmem:[%s4 + $0x2c] sm:$0xf]
  %v666 = vld [vmem:[%s4 + $0x30] sm:$0xf]
  %v667 = vld [vmem:[%s4 + $0x34] sm:$0xf]
  %v668 = vld [vmem:[%s4 + $0x38] sm:$0xf]
  %v669 = vld [vmem:[%s4 + $0x3c] sm:$0xf]
  %v702 = vunpack.c.l.b16 %v590
  %v703 = vunpack.c.l.b16 %v591
  %v704 = vunpack.c.l.b16 %v592
  %v705 = vunpack.c.l.b16 %v593
  %v706 = vunpack.c.l.b16 %v594
  %v707 = vunpack.c.l.b16 %v595
  %v708 = vunpack.c.l.b16 %v596
  %v709 = vunpack.c.l.b16 %v597
  %v710 = vunpack.c.l.b16 %v598
  %v711 = vunpack.c.l.b16 %v599
  %v712 = vunpack.c.l.b16 %v600
  %v713 = vunpack.c.l.b16 %v601
  %v714 = vunpack.c.l.b16 %v602
  %v715 = vunpack.c.l.b16 %v603
  %v716 = vunpack.c.l.b16 %v604
  %v717 = vunpack.c.l.b16 %v605
  %v718 = vunpack.c.l.b16 %v606
  %v719 = vunpack.c.l.b16 %v607
  %v720 = vunpack.c.l.b16 %v608
  %v721 = vunpack.c.l.b16 %v609
  %v722 = vunpack.c.l.b16 %v610
  %v723 = vunpack.c.l.b16 %v611
  %v724 = vunpack.c.l.b16 %v612
  %v725 = vunpack.c.l.b16 %v613
  %v726 = vunpack.c.l.b16 %v614
  %v727 = vunpack.c.l.b16 %v615
  %v728 = vunpack.c.l.b16 %v616
  %v729 = vunpack.c.l.b16 %v617
  %v730 = vunpack.c.l.b16 %v618
  %v731 = vunpack.c.l.b16 %v619
  %v732 = vunpack.c.l.b16 %v620
  %v733 = vunpack.c.l.b16 %v621
  %v734 = vpack.c.b16 %v703, %v702
  %v735 = vpack.c.b16 %v705, %v704
  %v736 = vpack.c.b16 %v707, %v706
  %v737 = vpack.c.b16 %v709, %v708
  %v738 = vpack.c.b16 %v711, %v710
  %v739 = vpack.c.b16 %v713, %v712
  %v740 = vpack.c.b16 %v715, %v714
  %v741 = vpack.c.b16 %v717, %v716
  %v742 = vpack.c.b16 %v719, %v718
  %v743 = vpack.c.b16 %v721, %v720
  %v744 = vpack.c.b16 %v723, %v722
  %v745 = vpack.c.b16 %v725, %v724
  %v746 = vpack.c.b16 %v727, %v726
  %v747 = vpack.c.b16 %v729, %v728
  %v748 = vpack.c.b16 %v731, %v730
  %v749 = vpack.c.b16 %v733, %v732
  %v782 = vunpack.c.l.b16 %v654
  %v783 = vunpack.c.l.b16 %v655
  %v784 = vunpack.c.l.b16 %v656
  %v785 = vunpack.c.l.b16 %v657
  %v786 = vunpack.c.l.b16 %v658
  %v787 = vunpack.c.l.b16 %v659
  %v788 = vunpack.c.l.b16 %v660
  %v789 = vunpack.c.l.b16 %v661
  %v790 = vunpack.c.l.b16 %v662
  %v791 = vunpack.c.l.b16 %v663
  %v792 = vunpack.c.l.b16 %v664
  %v793 = vunpack.c.l.b16 %v665
  %v794 = vunpack.c.l.b16 %v666
  %v795 = vunpack.c.l.b16 %v667
  %v796 = vunpack.c.l.b16 %v668
  %v797 = vunpack.c.l.b16 %v669
  %v798 = vpack.c.b16 %v783, %v782
  %v799 = vpack.c.b16 %v785, %v784
  %v800 = vpack.c.b16 %v787, %v786
  %v801 = vpack.c.b16 %v789, %v788
  %v802 = vpack.c.b16 %v791, %v790
  %v803 = vpack.c.b16 %v793, %v792
  %v804 = vpack.c.b16 %v795, %v794
  %v805 = vpack.c.b16 %v797, %v796
  %814 = vmatprep.subr.bf16.mxu0 0
  %815 = vmatpush1.bf16.msra.mxu0 %v805
  %816 = vmatprep.subr.bf16.mxu0 0
  %817 = vmatpush1.bf16.msra.mxu0 %v804
  %818 = vmatprep.subr.bf16.mxu0 0
  %819 = vmatpush1.bf16.msra.mxu0 %v803
  %820 = vmatprep.subr.bf16.mxu0 0
  %821 = vmatpush1.bf16.msra.mxu0 %v802
  %822 = vmatprep.subr.bf16.mxu0 0
  %823 = vmatpush1.bf16.msra.mxu0 %v801
  %824 = vmatprep.subr.bf16.mxu0 0
  %825 = vmatpush1.bf16.msra.mxu0 %v800
  %826 = vmatprep.subr.bf16.mxu0 0
  %827 = vmatpush1.bf16.msra.mxu0 %v799
  %828 = vmatprep.subr.bf16.mxu0 0
  %829 = vmatpush1.bf16.msra.mxu0 %v798
  %830 = vmatprep.subr.bf16.mxu0 0
  %831 = vmatpush2.bf16.msra.mxu0 0
  %832 = vmatprep.subr.bf16.mxu0 0
  %833 = vmatpush2.bf16.msra.mxu0 0
  %834 = vmatprep.subr.bf16.mxu0 0
  %835 = vmatpush2.bf16.msra.mxu0 0
  %836 = vmatprep.subr.bf16.mxu0 0
  %837 = vmatpush2.bf16.msra.mxu0 0
  %838 = vmatprep.subr.bf16.mxu0 0
  %839 = vmatpush2.bf16.msra.mxu0 0
  %840 = vmatprep.subr.bf16.mxu0 0
  %841 = vmatpush2.bf16.msra.mxu0 0
  %842 = vmatprep.subr.bf16.mxu0 0
  %843 = vmatpush2.bf16.msra.mxu0 0
  %844 = vmatprep.subr.bf16.mxu0 0
  %845 = vmatpush2.bf16.msra.mxu0 0
  %846 = vmatprep.mubr.bf16.mxu0 0
  %847 = vmatmul.mubr.bf16.gmra.mxu0 %v734
  %v848 = vpop.f32.mrf.mxu0
  %v849 = vadd.f32 0.0, %v848
  %v850 = vpop.f32.mrf.mxu0
  %v851 = vpop.f32.mrf.mxu0
  %v852 = vadd.f32 0.0, %v851
  %v853 = vpop.f32.mrf.mxu0
  %854 = vmatprep.mubr.bf16.mxu0 0
  %855 = vmatmul.mubr.bf16.gmra.mxu0 %v735
  %v856 = vpop.f32.mrf.mxu0
  %v857 = vadd.f32 0.0, %v856
  %v858 = vpop.f32.mrf.mxu0
  %v859 = vpop.f32.mrf.mxu0
  %v860 = vadd.f32 0.0, %v859
  %v861 = vpop.f32.mrf.mxu0
  %862 = vmatprep.mubr.bf16.mxu0 0
  %863 = vmatmul.mubr.bf16.gmra.mxu0 %v736
  %v864 = vpop.f32.mrf.mxu0
  %v865 = vadd.f32 0.0, %v864
  %v866 = vpop.f32.mrf.mxu0
  %v867 = vpop.f32.mrf.mxu0
  %v868 = vadd.f32 0.0, %v867
  %v869 = vpop.f32.mrf.mxu0
  %870 = vmatprep.mubr.bf16.mxu0 0
  %871 = vmatmul.mubr.bf16.gmra.mxu0 %v737
  %v872 = vpop.f32.mrf.mxu0
  %v873 = vadd.f32 0.0, %v872
  %v874 = vpop.f32.mrf.mxu0
  %v875 = vpop.f32.mrf.mxu0
  %v876 = vadd.f32 0.0, %v875
  %v877 = vpop.f32.mrf.mxu0
  %878 = vmatprep.mubr.bf16.mxu0 0
  %879 = vmatmul.mubr.bf16.gmra.mxu0 %v738
  %v880 = vpop.f32.mrf.mxu0
  %v881 = vadd.f32 0.0, %v880
  %v882 = vpop.f32.mrf.mxu0
  %v883 = vpop.f32.mrf.mxu0
  %v884 = vadd.f32 0.0, %v883
  %v885 = vpop.f32.mrf.mxu0
  %886 = vmatprep.mubr.bf16.mxu0 0
  %887 = vmatmul.mubr.bf16.gmra.mxu0 %v739
  %v888 = vpop.f32.mrf.mxu0
  %v889 = vadd.f32 0.0, %v888
  %v890 = vpop.f32.mrf.mxu0
  %v891 = vpop.f32.mrf.mxu0
  %v892 = vadd.f32 0.0, %v891
  %v893 = vpop.f32.mrf.mxu0
  %894 = vmatprep.mubr.bf16.mxu0 0
  %895 = vmatmul.mubr.bf16.gmra.mxu0 %v740
  %v896 = vpop.f32.mrf.mxu0
  %v897 = vadd.f32 0.0, %v896
  %v898 = vpop.f32.mrf.mxu0
  %v899 = vpop.f32.mrf.mxu0
  %v900 = vadd.f32 0.0, %v899
  %v901 = vpop.f32.mrf.mxu0
  %902 = vmatprep.mubr.bf16.mxu0 0
  %903 = vmatmul.mubr.bf16.gmra.mxu0 %v741
  %v904 = vpop.f32.mrf.mxu0
  %v905 = vadd.f32 0.0, %v904
  %v906 = vpop.f32.mrf.mxu0
  %v907 = vpop.f32.mrf.mxu0
  %v908 = vadd.f32 0.0, %v907
  %v909 = vpop.f32.mrf.mxu0
  %910 = vmatprep.mubr.bf16.mxu0 0
  %911 = vmatmul.mubr.bf16.gmra.mxu0 %v742
  %v912 = vpop.f32.mrf.mxu0
  %v913 = vadd.f32 0.0, %v912
  %v914 = vpop.f32.mrf.mxu0
  %v915 = vpop.f32.mrf.mxu0
  %v916 = vadd.f32 0.0, %v915
  %v917 = vpop.f32.mrf.mxu0
  %918 = vmatprep.mubr.bf16.mxu0 0
  %919 = vmatmul.mubr.bf16.gmra.mxu0 %v743
  %v920 = vpop.f32.mrf.mxu0
  %v921 = vadd.f32 0.0, %v920
  %v922 = vpop.f32.mrf.mxu0
  %v923 = vpop.f32.mrf.mxu0
  %v924 = vadd.f32 0.0, %v923
  %v925 = vpop.f32.mrf.mxu0
  %926 = vmatprep.mubr.bf16.mxu0 0
  %927 = vmatmul.mubr.bf16.gmra.mxu0 %v744
  %v928 = vpop.f32.mrf.mxu0
  %v929 = vadd.f32 0.0, %v928
  %v930 = vpop.f32.mrf.mxu0
  %v931 = vpop.f32.mrf.mxu0
  %v932 = vadd.f32 0.0, %v931
  %v933 = vpop.f32.mrf.mxu0
  %934 = vmatprep.mubr.bf16.mxu0 0
  %935 = vmatmul.mubr.bf16.gmra.mxu0 %v745
  %v936 = vpop.f32.mrf.mxu0
  %v937 = vadd.f32 0.0, %v936
  %v938 = vpop.f32.mrf.mxu0
  %v939 = vpop.f32.mrf.mxu0
  %v940 = vadd.f32 0.0, %v939
  %v941 = vpop.f32.mrf.mxu0
  %942 = vmatprep.mubr.bf16.mxu0 0
  %943 = vmatmul.mubr.bf16.gmra.mxu0 %v746
  %v944 = vpop.f32.mrf.mxu0
  %v945 = vadd.f32 0.0, %v944
  %v946 = vpop.f32.mrf.mxu0
  %v947 = vpop.f32.mrf.mxu0
  %v948 = vadd.f32 0.0, %v947
  %v949 = vpop.f32.mrf.mxu0
  %950 = vmatprep.mubr.bf16.mxu0 0
  %951 = vmatmul.mubr.bf16.gmra.mxu0 %v747
  %v952 = vpop.f32.mrf.mxu0
  %v953 = vadd.f32 0.0, %v952
  %v954 = vpop.f32.mrf.mxu0
  %v955 = vpop.f32.mrf.mxu0
  %v956 = vadd.f32 0.0, %v955
  %v957 = vpop.f32.mrf.mxu0
  %958 = vmatprep.mubr.bf16.mxu0 0
  %959 = vmatmul.mubr.bf16.gmra.mxu0 %v748
  %v960 = vpop.f32.mrf.mxu0
  %v961 = vadd.f32 0.0, %v960
  %v962 = vpop.f32.mrf.mxu0
  %v963 = vpop.f32.mrf.mxu0
  %v964 = vadd.f32 0.0, %v963
  %v965 = vpop.f32.mrf.mxu0
  %966 = vmatprep.mubr.bf16.mxu0 0
  %967 = vmatmul.mubr.bf16.gmra.mxu0 %v749
  %v968 = vpop.f32.mrf.mxu0
  %v969 = vadd.f32 0.0, %v968
  %v970 = vpop.f32.mrf.mxu0
  %v971 = vpop.f32.mrf.mxu0
  %v972 = vadd.f32 0.0, %v971
  %v973 = vpop.f32.mrf.mxu0
  %974 = vdwg.mxu0
  %v991 = vunpack.c.l.b16 %v638
  %v992 = vunpack.c.l.b16 %v639
  %v993 = vunpack.c.l.b16 %v640
  %v994 = vunpack.c.l.b16 %v641
  %v995 = vunpack.c.l.b16 %v642
  %v996 = vunpack.c.l.b16 %v643
  %v997 = vunpack.c.l.b16 %v644
  %v998 = vunpack.c.l.b16 %v645
  %v999 = vunpack.c.l.b16 %v646
  %v1000 = vunpack.c.l.b16 %v647
  %v1001 = vunpack.c.l.b16 %v648
  %v1002 = vunpack.c.l.b16 %v649
  %v1003 = vunpack.c.l.b16 %v650
  %v1004 = vunpack.c.l.b16 %v651
  %v1005 = vunpack.c.l.b16 %v652
  %v1006 = vunpack.c.l.b16 %v653
  %v1007 = vpack.c.b16 %v992, %v991
  %v1008 = vpack.c.b16 %v994, %v993
  %v1009 = vpack.c.b16 %v996, %v995
  %v1010 = vpack.c.b16 %v998, %v997
  %v1011 = vpack.c.b16 %v1000, %v999
  %v1012 = vpack.c.b16 %v1002, %v1001
  %v1013 = vpack.c.b16 %v1004, %v1003
  %v1014 = vpack.c.b16 %v1006, %v1005
  %1023 = vmatprep.subr.bf16.mxu0 0
  %1024 = vmatpush1.bf16.msra.mxu0 %v1014
  %1025 = vmatprep.subr.bf16.mxu0 0
  %1026 = vmatpush1.bf16.msra.mxu0 %v1013
  %1027 = vmatprep.subr.bf16.mxu0 0
  %1028 = vmatpush1.bf16.msra.mxu0 %v1012
  %1029 = vmatprep.subr.bf16.mxu0 0
  %1030 = vmatpush1.bf16.msra.mxu0 %v1011
  %1031 = vmatprep.subr.bf16.mxu0 0
  %1032 = vmatpush1.bf16.msra.mxu0 %v1010
  %1033 = vmatprep.subr.bf16.mxu0 0
  %1034 = vmatpush1.bf16.msra.mxu0 %v1009
  %1035 = vmatprep.subr.bf16.mxu0 0
  %1036 = vmatpush1.bf16.msra.mxu0 %v1008
  %1037 = vmatprep.subr.bf16.mxu0 0
  %1038 = vmatpush1.bf16.msra.mxu0 %v1007
  %1039 = vmatprep.subr.bf16.mxu0 0
  %1040 = vmatpush2.bf16.msra.mxu0 0
  %1041 = vmatprep.subr.bf16.mxu0 0
  %1042 = vmatpush2.bf16.msra.mxu0 0
  %1043 = vmatprep.subr.bf16.mxu0 0
  %1044 = vmatpush2.bf16.msra.mxu0 0
  %1045 = vmatprep.subr.bf16.mxu0 0
  %1046 = vmatpush2.bf16.msra.mxu0 0
  %1047 = vmatprep.subr.bf16.mxu0 0
  %1048 = vmatpush2.bf16.msra.mxu0 0
  %1049 = vmatprep.subr.bf16.mxu0 0
  %1050 = vmatpush2.bf16.msra.mxu0 0
  %1051 = vmatprep.subr.bf16.mxu0 0
  %1052 = vmatpush2.bf16.msra.mxu0 0
  %1053 = vmatprep.subr.bf16.mxu0 0
  %1054 = vmatpush2.bf16.msra.mxu0 0
  %1055 = vmatprep.mubr.bf16.mxu0 0
  %1056 = vmatmul.mubr.bf16.gmra.mxu0 %v622
  %v1057 = vpop.f32.mrf.mxu0
  %v1058 = vadd.f32 %v849, %v1057
  %v1059 = vpop.f32.mrf.mxu0
  %v1060 = vpop.f32.mrf.mxu0
  %v1061 = vadd.f32 %v852, %v1060
  %v1062 = vpop.f32.mrf.mxu0
  %1063 = vmatprep.mubr.bf16.mxu0 0
  %1064 = vmatmul.mubr.bf16.gmra.mxu0 %v623
  %v1065 = vpop.f32.mrf.mxu0
  %v1066 = vadd.f32 %v857, %v1065
  %v1067 = vpop.f32.mrf.mxu0
  %v1068 = vpop.f32.mrf.mxu0
  %v1069 = vadd.f32 %v860, %v1068
  %v1070 = vpop.f32.mrf.mxu0
  %1071 = vmatprep.mubr.bf16.mxu0 0
  %1072 = vmatmul.mubr.bf16.gmra.mxu0 %v624
  %v1073 = vpop.f32.mrf.mxu0
  %v1074 = vadd.f32 %v865, %v1073
  %v1075 = vpop.f32.mrf.mxu0
  %v1076 = vpop.f32.mrf.mxu0
  %v1077 = vadd.f32 %v868, %v1076
  %v1078 = vpop.f32.mrf.mxu0
  %1079 = vmatprep.mubr.bf16.mxu0 0
  %1080 = vmatmul.mubr.bf16.gmra.mxu0 %v625
  %v1081 = vpop.f32.mrf.mxu0
  %v1082 = vadd.f32 %v873, %v1081
  %v1083 = vpop.f32.mrf.mxu0
  %v1084 = vpop.f32.mrf.mxu0
  %v1085 = vadd.f32 %v876, %v1084
  %v1086 = vpop.f32.mrf.mxu0
  %1087 = vmatprep.mubr.bf16.mxu0 0
  %1088 = vmatmul.mubr.bf16.gmra.mxu0 %v626
  %v1089 = vpop.f32.mrf.mxu0
  %v1090 = vadd.f32 %v881, %v1089
  %v1091 = vpop.f32.mrf.mxu0
  %v1092 = vpop.f32.mrf.mxu0
  %v1093 = vadd.f32 %v884, %v1092
  %v1094 = vpop.f32.mrf.mxu0
  %1095 = vmatprep.mubr.bf16.mxu0 0
  %1096 = vmatmul.mubr.bf16.gmra.mxu0 %v627
  %v1097 = vpop.f32.mrf.mxu0
  %v1098 = vadd.f32 %v889, %v1097
  %v1099 = vpop.f32.mrf.mxu0
  %v1100 = vpop.f32.mrf.mxu0
  %v1101 = vadd.f32 %v892, %v1100
  %v1102 = vpop.f32.mrf.mxu0
  %1103 = vmatprep.mubr.bf16.mxu0 0
  %1104 = vmatmul.mubr.bf16.gmra.mxu0 %v628
  %v1105 = vpop.f32.mrf.mxu0
  %v1106 = vadd.f32 %v897, %v1105
  %v1107 = vpop.f32.mrf.mxu0
  %v1108 = vpop.f32.mrf.mxu0
  %v1109 = vadd.f32 %v900, %v1108
  %v1110 = vpop.f32.mrf.mxu0
  %1111 = vmatprep.mubr.bf16.mxu0 0
  %1112 = vmatmul.mubr.bf16.gmra.mxu0 %v629
  %v1113 = vpop.f32.mrf.mxu0
  %v1114 = vadd.f32 %v905, %v1113
  %v1115 = vpop.f32.mrf.mxu0
  %v1116 = vpop.f32.mrf.mxu0
  %v1117 = vadd.f32 %v908, %v1116
  %v1118 = vpop.f32.mrf.mxu0
  %1119 = vmatprep.mubr.bf16.mxu0 0
  %1120 = vmatmul.mubr.bf16.gmra.mxu0 %v630
  %v1121 = vpop.f32.mrf.mxu0
  %v1122 = vadd.f32 %v913, %v1121
  %v1123 = vpop.f32.mrf.mxu0
  %v1124 = vpop.f32.mrf.mxu0
  %v1125 = vadd.f32 %v916, %v1124
  %v1126 = vpop.f32.mrf.mxu0
  %1127 = vmatprep.mubr.bf16.mxu0 0
  %1128 = vmatmul.mubr.bf16.gmra.mxu0 %v631
  %v1129 = vpop.f32.mrf.mxu0
  %v1130 = vadd.f32 %v921, %v1129
  %v1131 = vpop.f32.mrf.mxu0
  %v1132 = vpop.f32.mrf.mxu0
  %v1133 = vadd.f32 %v924, %v1132
  %v1134 = vpop.f32.mrf.mxu0
  %1135 = vmatprep.mubr.bf16.mxu0 0
  %1136 = vmatmul.mubr.bf16.gmra.mxu0 %v632
  %v1137 = vpop.f32.mrf.mxu0
  %v1138 = vadd.f32 %v929, %v1137
  %v1139 = vpop.f32.mrf.mxu0
  %v1140 = vpop.f32.mrf.mxu0
  %v1141 = vadd.f32 %v932, %v1140
  %v1142 = vpop.f32.mrf.mxu0
  %1143 = vmatprep.mubr.bf16.mxu0 0
  %1144 = vmatmul.mubr.bf16.gmra.mxu0 %v633
  %v1145 = vpop.f32.mrf.mxu0
  %v1146 = vadd.f32 %v937, %v1145
  %v1147 = vpop.f32.mrf.mxu0
  %v1148 = vpop.f32.mrf.mxu0
  %v1149 = vadd.f32 %v940, %v1148
  %v1150 = vpop.f32.mrf.mxu0
  %1151 = vmatprep.mubr.bf16.mxu0 0
  %1152 = vmatmul.mubr.bf16.gmra.mxu0 %v634
  %v1153 = vpop.f32.mrf.mxu0
  %v1154 = vadd.f32 %v945, %v1153
  %v1155 = vpop.f32.mrf.mxu0
  %v1156 = vpop.f32.mrf.mxu0
  %v1157 = vadd.f32 %v948, %v1156
  %v1158 = vpop.f32.mrf.mxu0
  %1159 = vmatprep.mubr.bf16.mxu0 0
  %1160 = vmatmul.mubr.bf16.gmra.mxu0 %v635
  %v1161 = vpop.f32.mrf.mxu0
  %v1162 = vadd.f32 %v953, %v1161
  %v1163 = vpop.f32.mrf.mxu0
  %v1164 = vpop.f32.mrf.mxu0
  %v1165 = vadd.f32 %v956, %v1164
  %v1166 = vpop.f32.mrf.mxu0
  %1167 = vmatprep.mubr.bf16.mxu0 0
  %1168 = vmatmul.mubr.bf16.gmra.mxu0 %v636
  %v1169 = vpop.f32.mrf.mxu0
  %v1170 = vadd.f32 %v961, %v1169
  %v1171 = vpop.f32.mrf.mxu0
  %v1172 = vpop.f32.mrf.mxu0
  %v1173 = vadd.f32 %v964, %v1172
  %v1174 = vpop.f32.mrf.mxu0
  %1175 = vmatprep.mubr.bf16.mxu0 0
  %1176 = vmatmul.mubr.bf16.gmra.mxu0 %v637
  %v1177 = vpop.f32.mrf.mxu0
  %v1178 = vadd.f32 %v969, %v1177
  %v1179 = vpop.f32.mrf.mxu0
  %v1180 = vpop.f32.mrf.mxu0
  %v1181 = vadd.f32 %v972, %v1180
  %v1182 = vpop.f32.mrf.mxu0
  %1183 = vdwg.mxu0
  %v1184 = vld [vmem:[%s5] sm:$0x1]
  %v1186 = vlaneseq
  %v1187 = vshrl.u32 %v1186, 7
  %v1188 = vsub.s32 0, %v1187
  %v1189 = vrot.slane %v1184, %v1188
  %v1191 = vadd.f32 %v1058, %v1189
  %v1192 = vadd.f32 %v1061, %v1189
  %v1193 = vadd.f32 %v1066, %v1189
  %v1194 = vadd.f32 %v1069, %v1189
  %v1195 = vadd.f32 %v1074, %v1189
  %v1196 = vadd.f32 %v1077, %v1189
  %v1197 = vadd.f32 %v1082, %v1189
  %v1198 = vadd.f32 %v1085, %v1189
  %v1199 = vadd.f32 %v1090, %v1189
  %v1200 = vadd.f32 %v1093, %v1189
  %v1201 = vadd.f32 %v1098, %v1189
  %v1202 = vadd.f32 %v1101, %v1189
  %v1203 = vadd.f32 %v1106, %v1189
  %v1204 = vadd.f32 %v1109, %v1189
  %v1205 = vadd.f32 %v1114, %v1189
  %v1206 = vadd.f32 %v1117, %v1189
  %v1207 = vadd.f32 %v1122, %v1189
  %v1208 = vadd.f32 %v1125, %v1189
  %v1209 = vadd.f32 %v1130, %v1189
  %v1210 = vadd.f32 %v1133, %v1189
  %v1211 = vadd.f32 %v1138, %v1189
  %v1212 = vadd.f32 %v1141, %v1189
  %v1213 = vadd.f32 %v1146, %v1189
  %v1214 = vadd.f32 %v1149, %v1189
  %v1215 = vadd.f32 %v1154, %v1189
  %v1216 = vadd.f32 %v1157, %v1189
  %v1217 = vadd.f32 %v1162, %v1189
  %v1218 = vadd.f32 %v1165, %v1189
  %v1219 = vadd.f32 %v1170, %v1189
  %v1220 = vadd.f32 %v1173, %v1189
  %v1221 = vadd.f32 %v1178, %v1189
  %v1222 = vadd.f32 %v1181, %v1189
  %1223 = vmax.xlane.f32.xlu0 %v1191
  %v1224 = vpop.xlane.xlu0 %1223
  %1225 = vmax.xlane.f32.xlu0 %v1192
  %v1226 = vpop.xlane.xlu0 %1225
  %1227 = vmax.xlane.f32.xlu0 %v1193
  %v1228 = vpop.xlane.xlu0 %1227
  %1229 = vmax.xlane.f32.xlu0 %v1194
  %v1230 = vpop.xlane.xlu0 %1229
  %1231 = vmax.xlane.f32.xlu0 %v1195
  %v1232 = vpop.xlane.xlu0 %1231
  %1233 = vmax.xlane.f32.xlu0 %v1196
  %v1234 = vpop.xlane.xlu0 %1233
  %1235 = vmax.xlane.f32.xlu0 %v1197
  %v1236 = vpop.xlane.xlu0 %1235
  %1237 = vmax.xlane.f32.xlu0 %v1198
  %v1238 = vpop.xlane.xlu0 %1237
  %1239 = vmax.xlane.f32.xlu0 %v1199
  %v1240 = vpop.xlane.xlu0 %1239
  %1241 = vmax.xlane.f32.xlu0 %v1200
  %v1242 = vpop.xlane.xlu0 %1241
  %1243 = vmax.xlane.f32.xlu0 %v1201
  %v1244 = vpop.xlane.xlu0 %1243
  %1245 = vmax.xlane.f32.xlu0 %v1202
  %v1246 = vpop.xlane.xlu0 %1245
  %1247 = vmax.xlane.f32.xlu0 %v1203
  %v1248 = vpop.xlane.xlu0 %1247
  %1249 = vmax.xlane.f32.xlu0 %v1204
  %v1250 = vpop.xlane.xlu0 %1249
  %1251 = vmax.xlane.f32.xlu0 %v1205
  %v1252 = vpop.xlane.xlu0 %1251
  %1253 = vmax.xlane.f32.xlu0 %v1206
  %v1254 = vpop.xlane.xlu0 %1253
  %1255 = vmax.xlane.f32.xlu0 %v1207
  %v1256 = vpop.xlane.xlu0 %1255
  %1257 = vmax.xlane.f32.xlu0 %v1208
  %v1258 = vpop.xlane.xlu0 %1257
  %1259 = vmax.xlane.f32.xlu0 %v1209
  %v1260 = vpop.xlane.xlu0 %1259
  %1261 = vmax.xlane.f32.xlu0 %v1210
  %v1262 = vpop.xlane.xlu0 %1261
  %1263 = vmax.xlane.f32.xlu0 %v1211
  %v1264 = vpop.xlane.xlu0 %1263
  %1265 = vmax.xlane.f32.xlu0 %v1212
  %v1266 = vpop.xlane.xlu0 %1265
  %1267 = vmax.xlane.f32.xlu0 %v1213
  %v1268 = vpop.xlane.xlu0 %1267
  %1269 = vmax.xlane.f32.xlu0 %v1214
  %v1270 = vpop.xlane.xlu0 %1269
  %1271 = vmax.xlane.f32.xlu0 %v1215
  %v1272 = vpop.xlane.xlu0 %1271
  %1273 = vmax.xlane.f32.xlu0 %v1216
  %v1274 = vpop.xlane.xlu0 %1273
  %1275 = vmax.xlane.f32.xlu0 %v1217
  %v1276 = vpop.xlane.xlu0 %1275
  %1277 = vmax.xlane.f32.xlu0 %v1218
  %v1278 = vpop.xlane.xlu0 %1277
  %1279 = vmax.xlane.f32.xlu0 %v1219
  %v1280 = vpop.xlane.xlu0 %1279
  %1281 = vmax.xlane.f32.xlu0 %v1220
  %v1282 = vpop.xlane.xlu0 %1281
  %1283 = vmax.xlane.f32.xlu0 %v1221
  %v1284 = vpop.xlane.xlu0 %1283
  %1285 = vmax.xlane.f32.xlu0 %v1222
  %v1286 = vpop.xlane.xlu0 %1285
  %v1287 = vsub.f32 %v1191, %v1224
  %v1288 = vsub.f32 %v1192, %v1226
  %v1289 = vsub.f32 %v1193, %v1228
  %v1290 = vsub.f32 %v1194, %v1230
  %v1291 = vsub.f32 %v1195, %v1232
  %v1292 = vsub.f32 %v1196, %v1234
  %v1293 = vsub.f32 %v1197, %v1236
  %v1294 = vsub.f32 %v1198, %v1238
  %v1295 = vsub.f32 %v1199, %v1240
  %v1296 = vsub.f32 %v1200, %v1242
  %v1297 = vsub.f32 %v1201, %v1244
  %v1298 = vsub.f32 %v1202, %v1246
  %v1299 = vsub.f32 %v1203, %v1248
  %v1300 = vsub.f32 %v1204, %v1250
  %v1301 = vsub.f32 %v1205, %v1252
  %v1302 = vsub.f32 %v1206, %v1254
  %v1303 = vsub.f32 %v1207, %v1256
  %v1304 = vsub.f32 %v1208, %v1258
  %v1305 = vsub.f32 %v1209, %v1260
  %v1306 = vsub.f32 %v1210, %v1262
  %v1307 = vsub.f32 %v1211, %v1264
  %v1308 = vsub.f32 %v1212, %v1266
  %v1309 = vsub.f32 %v1213, %v1268
  %v1310 = vsub.f32 %v1214, %v1270
  %v1311 = vsub.f32 %v1215, %v1272
  %v1312 = vsub.f32 %v1216, %v1274
  %v1313 = vsub.f32 %v1217, %v1276
  %v1314 = vsub.f32 %v1218, %v1278
  %v1315 = vsub.f32 %v1219, %v1280
  %v1316 = vsub.f32 %v1220, %v1282
  %v1317 = vsub.f32 %v1221, %v1284
  %v1318 = vsub.f32 %v1222, %v1286
  %v1319 = vmul.f32 %v1287, 1.442695
  %v1320 = vpow.pop %v1319
  %v1321 = vmul.f32 %v1288, 1.442695
  %v1322 = vpow.pop %v1321
  %v1323 = vmul.f32 %v1289, 1.442695
  %v1324 = vpow.pop %v1323
  %v1325 = vmul.f32 %v1290, 1.442695
  %v1326 = vpow.pop %v1325
  %v1327 = vmul.f32 %v1291, 1.442695
  %v1328 = vpow.pop %v1327
  %v1329 = vmul.f32 %v1292, 1.442695
  %v1330 = vpow.pop %v1329
  %v1331 = vmul.f32 %v1293, 1.442695
  %v1332 = vpow.pop %v1331
  %v1333 = vmul.f32 %v1294, 1.442695
  %v1334 = vpow.pop %v1333
  %v1335 = vmul.f32 %v1295, 1.442695
  %v1336 = vpow.pop %v1335
  %v1337 = vmul.f32 %v1296, 1.442695
  %v1338 = vpow.pop %v1337
  %v1339 = vmul.f32 %v1297, 1.442695
  %v1340 = vpow.pop %v1339
  %v1341 = vmul.f32 %v1298, 1.442695
  %v1342 = vpow.pop %v1341
  %v1343 = vmul.f32 %v1299, 1.442695
  %v1344 = vpow.pop %v1343
  %v1345 = vmul.f32 %v1300, 1.442695
  %v1346 = vpow.pop %v1345
  %v1347 = vmul.f32 %v1301, 1.442695
  %v1348 = vpow.pop %v1347
  %v1349 = vmul.f32 %v1302, 1.442695
  %v1350 = vpow.pop %v1349
  %v1351 = vmul.f32 %v1303, 1.442695
  %v1352 = vpow.pop %v1351
  %v1353 = vmul.f32 %v1304, 1.442695
  %v1354 = vpow.pop %v1353
  %v1355 = vmul.f32 %v1305, 1.442695
  %v1356 = vpow.pop %v1355
  %v1357 = vmul.f32 %v1306, 1.442695
  %v1358 = vpow.pop %v1357
  %v1359 = vmul.f32 %v1307, 1.442695
  %v1360 = vpow.pop %v1359
  %v1361 = vmul.f32 %v1308, 1.442695
  %v1362 = vpow.pop %v1361
  %v1363 = vmul.f32 %v1309, 1.442695
  %v1364 = vpow.pop %v1363
  %v1365 = vmul.f32 %v1310, 1.442695
  %v1366 = vpow.pop %v1365
  %v1367 = vmul.f32 %v1311, 1.442695
  %v1368 = vpow.pop %v1367
  %v1369 = vmul.f32 %v1312, 1.442695
  %v1370 = vpow.pop %v1369
  %v1371 = vmul.f32 %v1313, 1.442695
  %v1372 = vpow.pop %v1371
  %v1373 = vmul.f32 %v1314, 1.442695
  %v1374 = vpow.pop %v1373
  %v1375 = vmul.f32 %v1315, 1.442695
  %v1376 = vpow.pop %v1375
  %v1377 = vmul.f32 %v1316, 1.442695
  %v1378 = vpow.pop %v1377
  %v1379 = vmul.f32 %v1317, 1.442695
  %v1380 = vpow.pop %v1379
  %v1381 = vmul.f32 %v1318, 1.442695
  %v1382 = vpow.pop %v1381
  %1383 = vadd.xlane.f32.xlu0 %v1320
  %v1384 = vpop.xlane.xlu0 %1383
  %1385 = vadd.xlane.f32.xlu0 %v1322
  %v1386 = vpop.xlane.xlu0 %1385
  %1387 = vadd.xlane.f32.xlu0 %v1324
  %v1388 = vpop.xlane.xlu0 %1387
  %1389 = vadd.xlane.f32.xlu0 %v1326
  %v1390 = vpop.xlane.xlu0 %1389
  %1391 = vadd.xlane.f32.xlu0 %v1328
  %v1392 = vpop.xlane.xlu0 %1391
  %1393 = vadd.xlane.f32.xlu0 %v1330
  %v1394 = vpop.xlane.xlu0 %1393
  %1395 = vadd.xlane.f32.xlu0 %v1332
  %v1396 = vpop.xlane.xlu0 %1395
  %1397 = vadd.xlane.f32.xlu0 %v1334
  %v1398 = vpop.xlane.xlu0 %1397
  %1399 = vadd.xlane.f32.xlu0 %v1336
  %v1400 = vpop.xlane.xlu0 %1399
  %1401 = vadd.xlane.f32.xlu0 %v1338
  %v1402 = vpop.xlane.xlu0 %1401
  %1403 = vadd.xlane.f32.xlu0 %v1340
  %v1404 = vpop.xlane.xlu0 %1403
  %1405 = vadd.xlane.f32.xlu0 %v1342
  %v1406 = vpop.xlane.xlu0 %1405
  %1407 = vadd.xlane.f32.xlu0 %v1344
  %v1408 = vpop.xlane.xlu0 %1407
  %1409 = vadd.xlane.f32.xlu0 %v1346
  %v1410 = vpop.xlane.xlu0 %1409
  %1411 = vadd.xlane.f32.xlu0 %v1348
  %v1412 = vpop.xlane.xlu0 %1411
  %1413 = vadd.xlane.f32.xlu0 %v1350
  %v1414 = vpop.xlane.xlu0 %1413
  %1415 = vadd.xlane.f32.xlu0 %v1352
  %v1416 = vpop.xlane.xlu0 %1415
  %1417 = vadd.xlane.f32.xlu0 %v1354
  %v1418 = vpop.xlane.xlu0 %1417
  %1419 = vadd.xlane.f32.xlu0 %v1356
  %v1420 = vpop.xlane.xlu0 %1419
  %1421 = vadd.xlane.f32.xlu0 %v1358
  %v1422 = vpop.xlane.xlu0 %1421
  %1423 = vadd.xlane.f32.xlu0 %v1360
  %v1424 = vpop.xlane.xlu0 %1423
  %1425 = vadd.xlane.f32.xlu0 %v1362
  %v1426 = vpop.xlane.xlu0 %1425
  %1427 = vadd.xlane.f32.xlu0 %v1364
  %v1428 = vpop.xlane.xlu0 %1427
  %1429 = vadd.xlane.f32.xlu0 %v1366
  %v1430 = vpop.xlane.xlu0 %1429
  %1431 = vadd.xlane.f32.xlu0 %v1368
  %v1432 = vpop.xlane.xlu0 %1431
  %1433 = vadd.xlane.f32.xlu0 %v1370
  %v1434 = vpop.xlane.xlu0 %1433
  %1435 = vadd.xlane.f32.xlu0 %v1372
  %v1436 = vpop.xlane.xlu0 %1435
  %1437 = vadd.xlane.f32.xlu0 %v1374
  %v1438 = vpop.xlane.xlu0 %1437
  %1439 = vadd.xlane.f32.xlu0 %v1376
  %v1440 = vpop.xlane.xlu0 %1439
  %1441 = vadd.xlane.f32.xlu0 %v1378
  %v1442 = vpop.xlane.xlu0 %1441
  %1443 = vadd.xlane.f32.xlu0 %v1380
  %v1444 = vpop.xlane.xlu0 %1443
  %1445 = vadd.xlane.f32.xlu0 %v1382
  %v1446 = vpop.xlane.xlu0 %1445
  %v1447 = vlog2.pop %v1384
  %v1448 = vmul.f32 %v1447, 0.6931472
  %v1449 = vlog2.pop %v1386
  %v1450 = vmul.f32 %v1449, 0.6931472
  %v1451 = vlog2.pop %v1388
  %v1452 = vmul.f32 %v1451, 0.6931472
  %v1453 = vlog2.pop %v1390
  %v1454 = vmul.f32 %v1453, 0.6931472
  %v1455 = vlog2.pop %v1392
  %v1456 = vmul.f32 %v1455, 0.6931472
  %v1457 = vlog2.pop %v1394
  %v1458 = vmul.f32 %v1457, 0.6931472
  %v1459 = vlog2.pop %v1396
  %v1460 = vmul.f32 %v1459, 0.6931472
  %v1461 = vlog2.pop %v1398
  %v1462 = vmul.f32 %v1461, 0.6931472
  %v1463 = vlog2.pop %v1400
  %v1464 = vmul.f32 %v1463, 0.6931472
  %v1465 = vlog2.pop %v1402
  %v1466 = vmul.f32 %v1465, 0.6931472
  %v1467 = vlog2.pop %v1404
  %v1468 = vmul.f32 %v1467, 0.6931472
  %v1469 = vlog2.pop %v1406
  %v1470 = vmul.f32 %v1469, 0.6931472
  %v1471 = vlog2.pop %v1408
  %v1472 = vmul.f32 %v1471, 0.6931472
  %v1473 = vlog2.pop %v1410
  %v1474 = vmul.f32 %v1473, 0.6931472
  %v1475 = vlog2.pop %v1412
  %v1476 = vmul.f32 %v1475, 0.6931472
  %v1477 = vlog2.pop %v1414
  %v1478 = vmul.f32 %v1477, 0.6931472
  %v1479 = vlog2.pop %v1416
  %v1480 = vmul.f32 %v1479, 0.6931472
  %v1481 = vlog2.pop %v1418
  %v1482 = vmul.f32 %v1481, 0.6931472
  %v1483 = vlog2.pop %v1420
  %v1484 = vmul.f32 %v1483, 0.6931472
  %v1485 = vlog2.pop %v1422
  %v1486 = vmul.f32 %v1485, 0.6931472
  %v1487 = vlog2.pop %v1424
  %v1488 = vmul.f32 %v1487, 0.6931472
  %v1489 = vlog2.pop %v1426
  %v1490 = vmul.f32 %v1489, 0.6931472
  %v1491 = vlog2.pop %v1428
  %v1492 = vmul.f32 %v1491, 0.6931472
  %v1493 = vlog2.pop %v1430
  %v1494 = vmul.f32 %v1493, 0.6931472
  %v1495 = vlog2.pop %v1432
  %v1496 = vmul.f32 %v1495, 0.6931472
  %v1497 = vlog2.pop %v1434
  %v1498 = vmul.f32 %v1497, 0.6931472
  %v1499 = vlog2.pop %v1436
  %v1500 = vmul.f32 %v1499, 0.6931472
  %v1501 = vlog2.pop %v1438
  %v1502 = vmul.f32 %v1501, 0.6931472
  %v1503 = vlog2.pop %v1440
  %v1504 = vmul.f32 %v1503, 0.6931472
  %v1505 = vlog2.pop %v1442
  %v1506 = vmul.f32 %v1505, 0.6931472
  %v1507 = vlog2.pop %v1444
  %v1508 = vmul.f32 %v1507, 0.6931472
  %v1509 = vlog2.pop %v1446
  %v1510 = vmul.f32 %v1509, 0.6931472
  %v1511 = vadd.f32 %v1224, %v1448
  %v1512 = vadd.f32 %v1226, %v1450
  %v1513 = vadd.f32 %v1228, %v1452
  %v1514 = vadd.f32 %v1230, %v1454
  %v1515 = vadd.f32 %v1232, %v1456
  %v1516 = vadd.f32 %v1234, %v1458
  %v1517 = vadd.f32 %v1236, %v1460
  %v1518 = vadd.f32 %v1238, %v1462
  %v1519 = vadd.f32 %v1240, %v1464
  %v1520 = vadd.f32 %v1242, %v1466
  %v1521 = vadd.f32 %v1244, %v1468
  %v1522 = vadd.f32 %v1246, %v1470
  %v1523 = vadd.f32 %v1248, %v1472
  %v1524 = vadd.f32 %v1250, %v1474
  %v1525 = vadd.f32 %v1252, %v1476
  %v1526 = vadd.f32 %v1254, %v1478
  %v1527 = vadd.f32 %v1256, %v1480
  %v1528 = vadd.f32 %v1258, %v1482
  %v1529 = vadd.f32 %v1260, %v1484
  %v1530 = vadd.f32 %v1262, %v1486
  %v1531 = vadd.f32 %v1264, %v1488
  %v1532 = vadd.f32 %v1266, %v1490
  %v1533 = vadd.f32 %v1268, %v1492
  %v1534 = vadd.f32 %v1270, %v1494
  %v1535 = vadd.f32 %v1272, %v1496
  %v1536 = vadd.f32 %v1274, %v1498
  %v1537 = vadd.f32 %v1276, %v1500
  %v1538 = vadd.f32 %v1278, %v1502
  %v1539 = vadd.f32 %v1280, %v1504
  %v1540 = vadd.f32 %v1282, %v1506
  %v1541 = vadd.f32 %v1284, %v1508
  %v1542 = vadd.f32 %v1286, %v1510
  %v1543 = vsub.f32 %v1191, %v1511
  %v1544 = vsub.f32 %v1192, %v1512
  %v1545 = vsub.f32 %v1193, %v1513
  %v1546 = vsub.f32 %v1194, %v1514
  %v1547 = vsub.f32 %v1195, %v1515
  %v1548 = vsub.f32 %v1196, %v1516
  %v1549 = vsub.f32 %v1197, %v1517
  %v1550 = vsub.f32 %v1198, %v1518
  %v1551 = vsub.f32 %v1199, %v1519
  %v1552 = vsub.f32 %v1200, %v1520
  %v1553 = vsub.f32 %v1201, %v1521
  %v1554 = vsub.f32 %v1202, %v1522
  %v1555 = vsub.f32 %v1203, %v1523
  %v1556 = vsub.f32 %v1204, %v1524
  %v1557 = vsub.f32 %v1205, %v1525
  %v1558 = vsub.f32 %v1206, %v1526
  %v1559 = vsub.f32 %v1207, %v1527
  %v1560 = vsub.f32 %v1208, %v1528
  %v1561 = vsub.f32 %v1209, %v1529
  %v1562 = vsub.f32 %v1210, %v1530
  %v1563 = vsub.f32 %v1211, %v1531
  %v1564 = vsub.f32 %v1212, %v1532
  %v1565 = vsub.f32 %v1213, %v1533
  %v1566 = vsub.f32 %v1214, %v1534
  %v1567 = vsub.f32 %v1215, %v1535
  %v1568 = vsub.f32 %v1216, %v1536
  %v1569 = vsub.f32 %v1217, %v1537
  %v1570 = vsub.f32 %v1218, %v1538
  %v1571 = vsub.f32 %v1219, %v1539
  %v1572 = vsub.f32 %v1220, %v1540
  %v1573 = vsub.f32 %v1221, %v1541
  %v1574 = vsub.f32 %v1222, %v1542
  %1575 = vst [vmem:[%s6] sm:$0xff] %v1543
  %1576 = vst [vmem:[%s6 + $0x8] sm:$0xff] %v1544
  %1577 = vst [vmem:[%s6 + $0x10] sm:$0xff] %v1545
  %1578 = vst [vmem:[%s6 + $0x18] sm:$0xff] %v1546
  %1579 = vst [vmem:[%s6 + $0x20] sm:$0xff] %v1547
  %1580 = vst [vmem:[%s6 + $0x28] sm:$0xff] %v1548
  %1581 = vst [vmem:[%s6 + $0x30] sm:$0xff] %v1549
  %1582 = vst [vmem:[%s6 + $0x38] sm:$0xff] %v1550
  %1583 = vst [vmem:[%s6 + $0x40] sm:$0xff] %v1551
  %1584 = vst [vmem:[%s6 + $0x48] sm:$0xff] %v1552
  %1585 = vst [vmem:[%s6 + $0x50] sm:$0xff] %v1553
  %1586 = vst [vmem:[%s6 + $0x58] sm:$0xff] %v1554
  %1587 = vst [vmem:[%s6 + $0x60] sm:$0xff] %v1555
  %1588 = vst [vmem:[%s6 + $0x68] sm:$0xff] %v1556
  %1589 = vst [vmem:[%s6 + $0x70] sm:$0xff] %v1557
  %1590 = vst [vmem:[%s6 + $0x78] sm:$0xff] %v1558
  %1591 = vst [vmem:[%s6 + $0x80] sm:$0xff] %v1559
  %1592 = vst [vmem:[%s6 + $0x88] sm:$0xff] %v1560
  %1593 = vst [vmem:[%s6 + $0x90] sm:$0xff] %v1561
  %1594 = vst [vmem:[%s6 + $0x98] sm:$0xff] %v1562
  %1595 = vst [vmem:[%s6 + $0xa0] sm:$0xff] %v1563
  %1596 = vst [vmem:[%s6 + $0xa8] sm:$0xff] %v1564
  %1597 = vst [vmem:[%s6 + $0xb0] sm:$0xff] %v1565
  %1598 = vst [vmem:[%s6 + $0xb8] sm:$0xff] %v1566
  %1599 = vst [vmem:[%s6 + $0xc0] sm:$0xff] %v1567
  %1600 = vst [vmem:[%s6 + $0xc8] sm:$0xff] %v1568
  %1601 = vst [vmem:[%s6 + $0xd0] sm:$0xff] %v1569
  %1602 = vst [vmem:[%s6 + $0xd8] sm:$0xff] %v1570
  %1603 = vst [vmem:[%s6 + $0xe0] sm:$0xff] %v1571
  %1604 = vst [vmem:[%s6 + $0xe8] sm:$0xff] %v1572
  %1605 = vst [vmem:[%s6 + $0xf0] sm:$0xff] %v1573
  %1606 = vst [vmem:[%s6 + $0xf8] sm:$0xff] %v1574
  // Predicated region
  $region26: #{sage_forward.5} parent=0 // pred_check
    _
  $region27: #{sage_forward.5} parent=0 // pred_check_branch
    %1608 = sbr.rel (0) target = $region29
  $region28: #{sage_forward.5} parent=0 // pred_region
    _
  $region29: #{sage_forward.5} parent=0 // pred_fallthru
    _
  // Predicated region
  $region30: #{sage_forward.5} parent=0 // pred_check
    _
  $region31: #{sage_forward.5} parent=0 // pred_check_branch
    %1610 = sbr.rel (0) target = $region33
  $region32: #{sage_forward.5} parent=0 // pred_region
    _
  $region33: #{sage_forward.5} parent=0 // pred_fallthru
    _

// kernel: sage_forward.3
$region0: #{sage_forward.3}
  #allocation0 [shape = 'u32[]', space=smem, size = 0x4, offset = 0x4, fixed_abs, tag = 'smem constant byte address 0x4 - core index']
  #allocation1 [shape = 'u32[144,128]{1,0:T(1,128)}', space=vmem, size = 0x12000, scoped, tag = 'internal scratch']
  %s0 = inlined_call_operand.vmem [shape: s8[256,256], index: 0, kind: input, shape index: {}]
  %s1 = inlined_call_operand.vmem [shape: f32[256,1], index: 1, kind: input, shape index: {}]
  %s2 = inlined_call_operand.vmem [shape: bf16[256,128], index: 2, kind: input, shape index: {}]
  %s3 = inlined_call_operand.vmem [shape: bf16[128,128], index: 3, kind: input, shape index: {}]
  %s4 = inlined_call_operand.vmem [shape: bf16[128,128], index: 4, kind: input, shape index: {}]
  %s5 = inlined_call_operand.vmem [shape: f32[1,128], index: 5, kind: input, shape index: {}]
  %s6 = inlined_call_operand.vmem [shape: bf16[256,128], index: 6, kind: output, shape index: {}]
  %s7 = sld [smem:[#allocation0]]
  $region34: #{sage_forward.3} parent=0
    _
  %s9 = ssub.s32 1, %s7
  %s10 = scalar_select 0, %s9, %s7
  // Predicated region
  $region2: #{sage_forward.3} parent=0 // pred_check
    _
  $region3: #{sage_forward.3} parent=0 // pred_check_branch
    %12 = sbr.rel (0) target = $region5
  $region4: #{sage_forward.3} parent=0 // pred_region
    _
  $region5: #{sage_forward.3} parent=0 // pred_fallthru
    _
  // Predicated region
  $region6: #{sage_forward.3} parent=0 // pred_check
    _
  $region7: #{sage_forward.3} parent=0 // pred_check_branch
    %14 = sbr.rel (0) target = $region9
  $region8: #{sage_forward.3} parent=0 // pred_region
    _
  $region9: #{sage_forward.3} parent=0 // pred_fallthru
    _
  // Predicated region
  $region10: #{sage_forward.3} parent=0 // pred_check
    _
  $region11: #{sage_forward.3} parent=0 // pred_check_branch
    %16 = sbr.rel (0) target = $region13
  $region12: #{sage_forward.3} parent=0 // pred_region
    _
  $region13: #{sage_forward.3} parent=0 // pred_fallthru
    _
  // Predicated region
  $region14: #{sage_forward.3} parent=0 // pred_check
    _
  $region15: #{sage_forward.3} parent=0 // pred_check_branch
    %18 = sbr.rel (0) target = $region17
  $region16: #{sage_forward.3} parent=0 // pred_region
    _
  $region17: #{sage_forward.3} parent=0 // pred_fallthru
    _
  // Predicated region
  $region18: #{sage_forward.3} parent=0 // pred_check
    _
  $region19: #{sage_forward.3} parent=0 // pred_check_branch
    %20 = sbr.rel (0) target = $region21
  $region20: #{sage_forward.3} parent=0 // pred_region
    _
  $region21: #{sage_forward.3} parent=0 // pred_fallthru
    _
  // Predicated region
  $region22: #{sage_forward.3} parent=0 // pred_check
    _
  $region23: #{sage_forward.3} parent=0 // pred_check_branch
    %22 = sbr.rel (0) target = $region25
  $region24: #{sage_forward.3} parent=0 // pred_region
    _
  $region25: #{sage_forward.3} parent=0 // pred_fallthru
    _
  %v24 = vld [vmem:[%s0] sm:$0xff]
  %v25 = vld [vmem:[%s0 + $0x8] sm:$0xff]
  %v26 = vld [vmem:[%s0 + $0x10] sm:$0xff]
  %v27 = vld [vmem:[%s0 + $0x18] sm:$0xff]
  %v28 = vld [vmem:[%s0 + $0x20] sm:$0xff]
  %v29 = vld [vmem:[%s0 + $0x28] sm:$0xff]
  %v30 = vld [vmem:[%s0 + $0x30] sm:$0xff]
  %v31 = vld [vmem:[%s0 + $0x38] sm:$0xff]
  %v32 = vld [vmem:[%s0 + $0x40] sm:$0xff]
  %v33 = vld [vmem:[%s0 + $0x48] sm:$0xff]
  %v34 = vld [vmem:[%s0 + $0x50] sm:$0xff]
  %v35 = vld [vmem:[%s0 + $0x58] sm:$0xff]
  %v36 = vld [vmem:[%s0 + $0x60] sm:$0xff]
  %v37 = vld [vmem:[%s0 + $0x68] sm:$0xff]
  %v38 = vld [vmem:[%s0 + $0x70] sm:$0xff]
  %v39 = vld [vmem:[%s0 + $0x78] sm:$0xff]
  %v40 = vunpack.c.l.s8.bf16 %v24
  %v41 = vunpack.c.l.s8.bf16 %v25
  %v42 = vunpack.c.h.s8.bf16 %v24
  %v43 = vunpack.c.h.s8.bf16 %v25
  %v44 = vunpack.c.l.s8.bf16 %v26
  %v45 = vunpack.c.l.s8.bf16 %v27
  %v46 = vunpack.c.h.s8.bf16 %v26
  %v47 = vunpack.c.h.s8.bf16 %v27
  %v48 = vunpack.c.l.s8.bf16 %v28
  %v49 = vunpack.c.l.s8.bf16 %v29
  %v50 = vunpack.c.h.s8.bf16 %v28
  %v51 = vunpack.c.h.s8.bf16 %v29
  %v52 = vunpack.c.l.s8.bf16 %v30
  %v53 = vunpack.c.l.s8.bf16 %v31
  %v54 = vunpack.c.h.s8.bf16 %v30
  %v55 = vunpack.c.h.s8.bf16 %v31
  %v56 = vunpack.c.l.s8.bf16 %v32
  %v57 = vunpack.c.l.s8.bf16 %v33
  %v58 = vunpack.c.h.s8.bf16 %v32
  %v59 = vunpack.c.h.s8.bf16 %v33
  %v60 = vunpack.c.l.s8.bf16 %v34
  %v61 = vunpack.c.l.s8.bf16 %v35
  %v62 = vunpack.c.h.s8.bf16 %v34
  %v63 = vunpack.c.h.s8.bf16 %v35
  %v64 = vunpack.c.l.s8.bf16 %v36
  %v65 = vunpack.c.l.s8.bf16 %v37
  %v66 = vunpack.c.h.s8.bf16 %v36
  %v67 = vunpack.c.h.s8.bf16 %v37
  %v68 = vunpack.c.l.s8.bf16 %v38
  %v69 = vunpack.c.l.s8.bf16 %v39
  %v70 = vunpack.c.h.s8.bf16 %v38
  %v71 = vunpack.c.h.s8.bf16 %v39
  %v72 = vld [vmem:[%s2] sm:$0xf]
  %v73 = vld [vmem:[%s2 + $0x4] sm:$0xf]
  %v74 = vld [vmem:[%s2 + $0x8] sm:$0xf]
  %v75 = vld [vmem:[%s2 + $0xc] sm:$0xf]
  %v76 = vld [vmem:[%s2 + $0x10] sm:$0xf]
  %v77 = vld [vmem:[%s2 + $0x14] sm:$0xf]
  %v78 = vld [vmem:[%s2 + $0x18] sm:$0xf]
  %v79 = vld [vmem:[%s2 + $0x1c] sm:$0xf]
  %v80 = vld [vmem:[%s2 + $0x20] sm:$0xf]
  %v81 = vld [vmem:[%s2 + $0x24] sm:$0xf]
  %v82 = vld [vmem:[%s2 + $0x28] sm:$0xf]
  %v83 = vld [vmem:[%s2 + $0x2c] sm:$0xf]
  %v84 = vld [vmem:[%s2 + $0x30] sm:$0xf]
  %v85 = vld [vmem:[%s2 + $0x34] sm:$0xf]
  %v86 = vld [vmem:[%s2 + $0x38] sm:$0xf]
  %v87 = vld [vmem:[%s2 + $0x3c] sm:$0xf]
  %v88 = vld [vmem:[%s2 + $0x40] sm:$0xf]
  %v89 = vld [vmem:[%s2 + $0x44] sm:$0xf]
  %v90 = vld [vmem:[%s2 + $0x48] sm:$0xf]
  %v91 = vld [vmem:[%s2 + $0x4c] sm:$0xf]
  %v92 = vld [vmem:[%s2 + $0x50] sm:$0xf]
  %v93 = vld [vmem:[%s2 + $0x54] sm:$0xf]
  %v94 = vld [vmem:[%s2 + $0x58] sm:$0xf]
  %v95 = vld [vmem:[%s2 + $0x5c] sm:$0xf]
  %v96 = vld [vmem:[%s2 + $0x60] sm:$0xf]
  %v97 = vld [vmem:[%s2 + $0x64] sm:$0xf]
  %v98 = vld [vmem:[%s2 + $0x68] sm:$0xf]
  %v99 = vld [vmem:[%s2 + $0x6c] sm:$0xf]
  %v100 = vld [vmem:[%s2 + $0x70] sm:$0xf]
  %v101 = vld [vmem:[%s2 + $0x74] sm:$0xf]
  %v102 = vld [vmem:[%s2 + $0x78] sm:$0xf]
  %v103 = vld [vmem:[%s2 + $0x7c] sm:$0xf]
  %v136 = vunpack.c.l.b16 %v72
  %v137 = vunpack.c.l.b16 %v73
  %v138 = vunpack.c.l.b16 %v74
  %v139 = vunpack.c.l.b16 %v75
  %v140 = vunpack.c.l.b16 %v76
  %v141 = vunpack.c.l.b16 %v77
  %v142 = vunpack.c.l.b16 %v78
  %v143 = vunpack.c.l.b16 %v79
  %v144 = vunpack.c.l.b16 %v80
  %v145 = vunpack.c.l.b16 %v81
  %v146 = vunpack.c.l.b16 %v82
  %v147 = vunpack.c.l.b16 %v83
  %v148 = vunpack.c.l.b16 %v84
  %v149 = vunpack.c.l.b16 %v85
  %v150 = vunpack.c.l.b16 %v86
  %v151 = vunpack.c.l.b16 %v87
  %v152 = vunpack.c.l.b16 %v88
  %v153 = vunpack.c.l.b16 %v89
  %v154 = vunpack.c.l.b16 %v90
  %v155 = vunpack.c.l.b16 %v91
  %v156 = vunpack.c.l.b16 %v92
  %v157 = vunpack.c.l.b16 %v93
  %v158 = vunpack.c.l.b16 %v94
  %v159 = vunpack.c.l.b16 %v95
  %v160 = vunpack.c.l.b16 %v96
  %v161 = vunpack.c.l.b16 %v97
  %v162 = vunpack.c.l.b16 %v98
  %v163 = vunpack.c.l.b16 %v99
  %v164 = vunpack.c.l.b16 %v100
  %v165 = vunpack.c.l.b16 %v101
  %v166 = vunpack.c.l.b16 %v102
  %v167 = vunpack.c.l.b16 %v103
  %v168 = vpack.c.b16 %v137, %v136
  %v169 = vpack.c.b16 %v139, %v138
  %v170 = vpack.c.b16 %v141, %v140
  %v171 = vpack.c.b16 %v143, %v142
  %v172 = vpack.c.b16 %v145, %v144
  %v173 = vpack.c.b16 %v147, %v146
  %v174 = vpack.c.b16 %v149, %v148
  %v175 = vpack.c.b16 %v151, %v150
  %v176 = vpack.c.b16 %v153, %v152
  %v177 = vpack.c.b16 %v155, %v154
  %v178 = vpack.c.b16 %v157, %v156
  %v179 = vpack.c.b16 %v159, %v158
  %v180 = vpack.c.b16 %v161, %v160
  %v181 = vpack.c.b16 %v163, %v162
  %v182 = vpack.c.b16 %v165, %v164
  %v183 = vpack.c.b16 %v167, %v166
  %200 = vmatprep.subr.bf16.mxu0 0
  %201 = vmatpush1.bf16.msra.mxu0 %v175
  %202 = vmatprep.subr.bf16.mxu0 0
  %203 = vmatpush1.bf16.msra.mxu0 %v174
  %204 = vmatprep.subr.bf16.mxu0 0
  %205 = vmatpush1.bf16.msra.mxu0 %v173
  %206 = vmatprep.subr.bf16.mxu0 0
  %207 = vmatpush1.bf16.msra.mxu0 %v172
  %208 = vmatprep.subr.bf16.mxu0 0
  %209 = vmatpush1.bf16.msra.mxu0 %v171
  %210 = vmatprep.subr.bf16.mxu0 0
  %211 = vmatpush1.bf16.msra.mxu0 %v170
  %212 = vmatprep.subr.bf16.mxu0 0
  %213 = vmatpush1.bf16.msra.mxu0 %v169
  %214 = vmatprep.subr.bf16.mxu0 0
  %215 = vmatpush1.bf16.msra.mxu0 %v168
  %216 = vmatprep.subr.bf16.mxu0 0
  %217 = vmatpush2.bf16.msra.mxu0 %v183
  %218 = vmatprep.subr.bf16.mxu0 0
  %219 = vmatpush2.bf16.msra.mxu0 %v182
  %220 = vmatprep.subr.bf16.mxu0 0
  %221 = vmatpush2.bf16.msra.mxu0 %v181
  %222 = vmatprep.subr.bf16.mxu0 0
  %223 = vmatpush2.bf16.msra.mxu0 %v180
  %224 = vmatprep.subr.bf16.mxu0 0
  %225 = vmatpush2.bf16.msra.mxu0 %v179
  %226 = vmatprep.subr.bf16.mxu0 0
  %227 = vmatpush2.bf16.msra.mxu0 %v178
  %228 = vmatprep.subr.bf16.mxu0 0
  %229 = vmatpush2.bf16.msra.mxu0 %v177
  %230 = vmatprep.subr.bf16.mxu0 0
  %231 = vmatpush2.bf16.msra.mxu0 %v176
  %232 = vmatprep.mubr.bf16.mxu0 %v41
  %233 = vmatmul.mubr.bf16.gmra.mxu0 %v40
  %v234 = vpop.f32.mrf.mxu0
  %v235 = vadd.f32 0.0, %v234
  %v236 = vpop.f32.mrf.mxu0
  %v237 = vpop.f32.mrf.mxu0
  %v238 = vadd.f32 0.0, %v237
  %v239 = vpop.f32.mrf.mxu0
  %240 = vmatprep.mubr.bf16.mxu0 %v43
  %241 = vmatmul.mubr.bf16.gmra.mxu0 %v42
  %v242 = vpop.f32.mrf.mxu0
  %v243 = vadd.f32 0.0, %v242
  %v244 = vpop.f32.mrf.mxu0
  %v245 = vpop.f32.mrf.mxu0
  %v246 = vadd.f32 0.0, %v245
  %v247 = vpop.f32.mrf.mxu0
  %248 = vmatprep.mubr.bf16.mxu0 %v45
  %249 = vmatmul.mubr.bf16.gmra.mxu0 %v44
  %v250 = vpop.f32.mrf.mxu0
  %v251 = vadd.f32 0.0, %v250
  %v252 = vpop.f32.mrf.mxu0
  %v253 = vpop.f32.mrf.mxu0
  %v254 = vadd.f32 0.0, %v253
  %v255 = vpop.f32.mrf.mxu0
  %256 = vmatprep.mubr.bf16.mxu0 %v47
  %257 = vmatmul.mubr.bf16.gmra.mxu0 %v46
  %v258 = vpop.f32.mrf.mxu0
  %v259 = vadd.f32 0.0, %v258
  %v260 = vpop.f32.mrf.mxu0
  %v261 = vpop.f32.mrf.mxu0
  %v262 = vadd.f32 0.0, %v261
  %v263 = vpop.f32.mrf.mxu0
  %264 = vmatprep.mubr.bf16.mxu0 %v49
  %265 = vmatmul.mubr.bf16.gmra.mxu0 %v48
  %v266 = vpop.f32.mrf.mxu0
  %v267 = vadd.f32 0.0, %v266
  %v268 = vpop.f32.mrf.mxu0
  %v269 = vpop.f32.mrf.mxu0
  %v270 = vadd.f32 0.0, %v269
  %v271 = vpop.f32.mrf.mxu0
  %272 = vmatprep.mubr.bf16.mxu0 %v51
  %273 = vmatmul.mubr.bf16.gmra.mxu0 %v50
  %v274 = vpop.f32.mrf.mxu0
  %v275 = vadd.f32 0.0, %v274
  %v276 = vpop.f32.mrf.mxu0
  %v277 = vpop.f32.mrf.mxu0
  %v278 = vadd.f32 0.0, %v277
  %v279 = vpop.f32.mrf.mxu0
  %280 = vmatprep.mubr.bf16.mxu0 %v53
  %281 = vmatmul.mubr.bf16.gmra.mxu0 %v52
  %v282 = vpop.f32.mrf.mxu0
  %v283 = vadd.f32 0.0, %v282
  %v284 = vpop.f32.mrf.mxu0
  %v285 = vpop.f32.mrf.mxu0
  %v286 = vadd.f32 0.0, %v285
  %v287 = vpop.f32.mrf.mxu0
  %288 = vmatprep.mubr.bf16.mxu0 %v55
  %289 = vmatmul.mubr.bf16.gmra.mxu0 %v54
  %v290 = vpop.f32.mrf.mxu0
  %v291 = vadd.f32 0.0, %v290
  %v292 = vpop.f32.mrf.mxu0
  %v293 = vpop.f32.mrf.mxu0
  %v294 = vadd.f32 0.0, %v293
  %v295 = vpop.f32.mrf.mxu0
  %296 = vmatprep.mubr.bf16.mxu0 %v57
  %297 = vmatmul.mubr.bf16.gmra.mxu0 %v56
  %v298 = vpop.f32.mrf.mxu0
  %v299 = vadd.f32 0.0, %v298
  %v300 = vpop.f32.mrf.mxu0
  %v301 = vpop.f32.mrf.mxu0
  %v302 = vadd.f32 0.0, %v301
  %v303 = vpop.f32.mrf.mxu0
  %304 = vmatprep.mubr.bf16.mxu0 %v59
  %305 = vmatmul.mubr.bf16.gmra.mxu0 %v58
  %v306 = vpop.f32.mrf.mxu0
  %v307 = vadd.f32 0.0, %v306
  %v308 = vpop.f32.mrf.mxu0
  %v309 = vpop.f32.mrf.mxu0
  %v310 = vadd.f32 0.0, %v309
  %v311 = vpop.f32.mrf.mxu0
  %312 = vmatprep.mubr.bf16.mxu0 %v61
  %313 = vmatmul.mubr.bf16.gmra.mxu0 %v60
  %v314 = vpop.f32.mrf.mxu0
  %v315 = vadd.f32 0.0, %v314
  %v316 = vpop.f32.mrf.mxu0
  %v317 = vpop.f32.mrf.mxu0
  %v318 = vadd.f32 0.0, %v317
  %v319 = vpop.f32.mrf.mxu0
  %320 = vmatprep.mubr.bf16.mxu0 %v63
  %321 = vmatmul.mubr.bf16.gmra.mxu0 %v62
  %v322 = vpop.f32.mrf.mxu0
  %v323 = vadd.f32 0.0, %v322
  %v324 = vpop.f32.mrf.mxu0
  %v325 = vpop.f32.mrf.mxu0
  %v326 = vadd.f32 0.0, %v325
  %v327 = vpop.f32.mrf.mxu0
  %328 = vmatprep.mubr.bf16.mxu0 %v65
  %329 = vmatmul.mubr.bf16.gmra.mxu0 %v64
  %v330 = vpop.f32.mrf.mxu0
  %v331 = vadd.f32 0.0, %v330
  %v332 = vpop.f32.mrf.mxu0
  %v333 = vpop.f32.mrf.mxu0
  %v334 = vadd.f32 0.0, %v333
  %v335 = vpop.f32.mrf.mxu0
  %336 = vmatprep.mubr.bf16.mxu0 %v67
  %337 = vmatmul.mubr.bf16.gmra.mxu0 %v66
  %v338 = vpop.f32.mrf.mxu0
  %v339 = vadd.f32 0.0, %v338
  %v340 = vpop.f32.mrf.mxu0
  %v341 = vpop.f32.mrf.mxu0
  %v342 = vadd.f32 0.0, %v341
  %v343 = vpop.f32.mrf.mxu0
  %344 = vmatprep.mubr.bf16.mxu0 %v69
  %345 = vmatmul.mubr.bf16.gmra.mxu0 %v68
  %v346 = vpop.f32.mrf.mxu0
  %v347 = vadd.f32 0.0, %v346
  %v348 = vpop.f32.mrf.mxu0
  %v349 = vpop.f32.mrf.mxu0
  %v350 = vadd.f32 0.0, %v349
  %v351 = vpop.f32.mrf.mxu0
  %352 = vmatprep.mubr.bf16.mxu0 %v71
  %353 = vmatmul.mubr.bf16.gmra.mxu0 %v70
  %v354 = vpop.f32.mrf.mxu0
  %v355 = vadd.f32 0.0, %v354
  %v356 = vpop.f32.mrf.mxu0
  %v357 = vpop.f32.mrf.mxu0
  %v358 = vadd.f32 0.0, %v357
  %v359 = vpop.f32.mrf.mxu0
  %360 = vdwg.mxu0
  %v361 = vld [vmem:[%s1] sm:$0xff]
  %v362 = vld [vmem:[%s1 + $0x8] sm:$0xff]
  %v363 = vld [vmem:[%s1 + $0x10] sm:$0xff]
  %v364 = vld [vmem:[%s1 + $0x18] sm:$0xff]
  %v365 = vld [vmem:[%s1 + $0x20] sm:$0xff]
  %v366 = vld [vmem:[%s1 + $0x28] sm:$0xff]
  %v367 = vld [vmem:[%s1 + $0x30] sm:$0xff]
  %v368 = vld [vmem:[%s1 + $0x38] sm:$0xff]
  %v369 = vld [vmem:[%s1 + $0x40] sm:$0xff]
  %v370 = vld [vmem:[%s1 + $0x48] sm:$0xff]
  %v371 = vld [vmem:[%s1 + $0x50] sm:$0xff]
  %v372 = vld [vmem:[%s1 + $0x58] sm:$0xff]
  %v373 = vld [vmem:[%s1 + $0x60] sm:$0xff]
  %v374 = vld [vmem:[%s1 + $0x68] sm:$0xff]
  %v375 = vld [vmem:[%s1 + $0x70] sm:$0xff]
  %v376 = vld [vmem:[%s1 + $0x78] sm:$0xff]
  %v377 = vld [vmem:[%s1 + $0x80] sm:$0xff]
  %v378 = vld [vmem:[%s1 + $0x88] sm:$0xff]
  %v379 = vld [vmem:[%s1 + $0x90] sm:$0xff]
  %v380 = vld [vmem:[%s1 + $0x98] sm:$0xff]
  %v381 = vld [vmem:[%s1 + $0xa0] sm:$0xff]
  %v382 = vld [vmem:[%s1 + $0xa8] sm:$0xff]
  %v383 = vld [vmem:[%s1 + $0xb0] sm:$0xff]
  %v384 = vld [vmem:[%s1 + $0xb8] sm:$0xff]
  %v385 = vld [vmem:[%s1 + $0xc0] sm:$0xff]
  %v386 = vld [vmem:[%s1 + $0xc8] sm:$0xff]
  %v387 = vld [vmem:[%s1 + $0xd0] sm:$0xff]
  %v388 = vld [vmem:[%s1 + $0xd8] sm:$0xff]
  %v389 = vld [vmem:[%s1 + $0xe0] sm:$0xff]
  %v390 = vld [vmem:[%s1 + $0xe8] sm:$0xff]
  %v391 = vld [vmem:[%s1 + $0xf0] sm:$0xff]
  %v392 = vld [vmem:[%s1 + $0xf8] sm:$0xff]
  %394 = vset.pattern.permute.xlu0 0
  %395 = vperm.xlu0 %394, %v361
  %v396 = vpop.permute.xlu0 %395
  %399 = vset.pattern.permute.xlu0 0
  %400 = vperm.xlu0 %399, %v362
  %v401 = vpop.permute.xlu0 %400
  %404 = vset.pattern.permute.xlu0 0
  %405 = vperm.xlu0 %404, %v363
  %v406 = vpop.permute.xlu0 %405
  %409 = vset.pattern.permute.xlu0 0
  %410 = vperm.xlu0 %409, %v364
  %v411 = vpop.permute.xlu0 %410
  %414 = vset.pattern.permute.xlu0 0
  %415 = vperm.xlu0 %414, %v365
  %v416 = vpop.permute.xlu0 %415
  %419 = vset.pattern.permute.xlu0 0
  %420 = vperm.xlu0 %419, %v366
  %v421 = vpop.permute.xlu0 %420
  %424 = vset.pattern.permute.xlu0 0
  %425 = vperm.xlu0 %424, %v367
  %v426 = vpop.permute.xlu0 %425
  %429 = vset.pattern.permute.xlu0 0
  %430 = vperm.xlu0 %429, %v368
  %v431 = vpop.permute.xlu0 %430
  %434 = vset.pattern.permute.xlu0 0
  %435 = vperm.xlu0 %434, %v369
  %v436 = vpop.permute.xlu0 %435
  %439 = vset.pattern.permute.xlu0 0
  %440 = vperm.xlu0 %439, %v370
  %v441 = vpop.permute.xlu0 %440
  %444 = vset.pattern.permute.xlu0 0
  %445 = vperm.xlu0 %444, %v371
  %v446 = vpop.permute.xlu0 %445
  %449 = vset.pattern.permute.xlu0 0
  %450 = vperm.xlu0 %449, %v372
  %v451 = vpop.permute.xlu0 %450
  %454 = vset.pattern.permute.xlu0 0
  %455 = vperm.xlu0 %454, %v373
  %v456 = vpop.permute.xlu0 %455
  %459 = vset.pattern.permute.xlu0 0
  %460 = vperm.xlu0 %459, %v374
  %v461 = vpop.permute.xlu0 %460
  %464 = vset.pattern.permute.xlu0 0
  %465 = vperm.xlu0 %464, %v375
  %v466 = vpop.permute.xlu0 %465
  %469 = vset.pattern.permute.xlu0 0
  %470 = vperm.xlu0 %469, %v376
  %v471 = vpop.permute.xlu0 %470
  %474 = vset.pattern.permute.xlu0 0
  %475 = vperm.xlu0 %474, %v377
  %v476 = vpop.permute.xlu0 %475
  %479 = vset.pattern.permute.xlu0 0
  %480 = vperm.xlu0 %479, %v378
  %v481 = vpop.permute.xlu0 %480
  %484 = vset.pattern.permute.xlu0 0
  %485 = vperm.xlu0 %484, %v379
  %v486 = vpop.permute.xlu0 %485
  %489 = vset.pattern.permute.xlu0 0
  %490 = vperm.xlu0 %489, %v380
  %v491 = vpop.permute.xlu0 %490
  %494 = vset.pattern.permute.xlu0 0
  %495 = vperm.xlu0 %494, %v381
  %v496 = vpop.permute.xlu0 %495
  %499 = vset.pattern.permute.xlu0 0
  %500 = vperm.xlu0 %499, %v382
  %v501 = vpop.permute.xlu0 %500
  %504 = vset.pattern.permute.xlu0 0
  %505 = vperm.xlu0 %504, %v383
  %v506 = vpop.permute.xlu0 %505
  %509 = vset.pattern.permute.xlu0 0
  %510 = vperm.xlu0 %509, %v384
  %v511 = vpop.permute.xlu0 %510
  %514 = vset.pattern.permute.xlu0 0
  %515 = vperm.xlu0 %514, %v385
  %v516 = vpop.permute.xlu0 %515
  %519 = vset.pattern.permute.xlu0 0
  %520 = vperm.xlu0 %519, %v386
  %v521 = vpop.permute.xlu0 %520
  %524 = vset.pattern.permute.xlu0 0
  %525 = vperm.xlu0 %524, %v387
  %v526 = vpop.permute.xlu0 %525
  %529 = vset.pattern.permute.xlu0 0
  %530 = vperm.xlu0 %529, %v388
  %v531 = vpop.permute.xlu0 %530
  %534 = vset.pattern.permute.xlu0 0
  %535 = vperm.xlu0 %534, %v389
  %v536 = vpop.permute.xlu0 %535
  %539 = vset.pattern.permute.xlu0 0
  %540 = vperm.xlu0 %539, %v390
  %v541 = vpop.permute.xlu0 %540
  %544 = vset.pattern.permute.xlu0 0
  %545 = vperm.xlu0 %544, %v391
  %v546 = vpop.permute.xlu0 %545
  %549 = vset.pattern.permute.xlu0 0
  %550 = vperm.xlu0 %549, %v392
  %v551 = vpop.permute.xlu0 %550
  %v553 = vmul.f32 %v235, %v396
  %v554 = vmul.f32 %v238, %v401
  %v555 = vmul.f32 %v243, %v406
  %v556 = vmul.f32 %v246, %v411
  %v557 = vmul.f32 %v251, %v416
  %v558 = vmul.f32 %v254, %v421
  %v559 = vmul.f32 %v259, %v426
  %v560 = vmul.f32 %v262, %v431
  %v561 = vmul.f32 %v267, %v436
  %v562 = vmul.f32 %v270, %v441
  %v563 = vmul.f32 %v275, %v446
  %v564 = vmul.f32 %v278, %v451
  %v565 = vmul.f32 %v283, %v456
  %v566 = vmul.f32 %v286, %v461
  %v567 = vmul.f32 %v291, %v466
  %v568 = vmul.f32 %v294, %v471
  %v569 = vmul.f32 %v299, %v476
  %v570 = vmul.f32 %v302, %v481
  %v571 = vmul.f32 %v307, %v486
  %v572 = vmul.f32 %v310, %v491
  %v573 = vmul.f32 %v315, %v496
  %v574 = vmul.f32 %v318, %v501
  %v575 = vmul.f32 %v323, %v506
  %v576 = vmul.f32 %v326, %v511
  %v577 = vmul.f32 %v331, %v516
  %v578 = vmul.f32 %v334, %v521
  %v579 = vmul.f32 %v339, %v526
  %v580 = vmul.f32 %v342, %v531
  %v581 = vmul.f32 %v347, %v536
  %v582 = vmul.f32 %v350, %v541
  %v583 = vmul.f32 %v355, %v546
  %v584 = vmul.f32 %v358, %v551
  %s585 = smul.u32 0, 256
  %s586 = sshra.s32 %s585, 3
  %s587 = sand.u32 %s585, 7
  %s588 = smul.addr %s586, 4
  %s589 = scalar_lea.vmem %s2, %s588
  %v590 = vld [vmem:[%s589] sm:$0xf]
  %v591 = vld [vmem:[%s589 + $0x4] sm:$0xf]
  %v592 = vld [vmem:[%s589 + $0x8] sm:$0xf]
  %v593 = vld [vmem:[%s589 + $0xc] sm:$0xf]
  %v594 = vld [vmem:[%s589 + $0x10] sm:$0xf]
  %v595 = vld [vmem:[%s589 + $0x14] sm:$0xf]
  %v596 = vld [vmem:[%s589 + $0x18] sm:$0xf]
  %v597 = vld [vmem:[%s589 + $0x1c] sm:$0xf]
  %v598 = vld [vmem:[%s589 + $0x20] sm:$0xf]
  %v599 = vld [vmem:[%s589 + $0x24] sm:$0xf]
  %v600 = vld [vmem:[%s589 + $0x28] sm:$0xf]
  %v601 = vld [vmem:[%s589 + $0x2c] sm:$0xf]
  %v602 = vld [vmem:[%s589 + $0x30] sm:$0xf]
  %v603 = vld [vmem:[%s589 + $0x34] sm:$0xf]
  %v604 = vld [vmem:[%s589 + $0x38] sm:$0xf]
  %v605 = vld [vmem:[%s589 + $0x3c] sm:$0xf]
  %v606 = vld [vmem:[%s589 + $0x40] sm:$0xf]
  %v607 = vld [vmem:[%s589 + $0x44] sm:$0xf]
  %v608 = vld [vmem:[%s589 + $0x48] sm:$0xf]
  %v609 = vld [vmem:[%s589 + $0x4c] sm:$0xf]
  %v610 = vld [vmem:[%s589 + $0x50] sm:$0xf]
  %v611 = vld [vmem:[%s589 + $0x54] sm:$0xf]
  %v612 = vld [vmem:[%s589 + $0x58] sm:$0xf]
  %v613 = vld [vmem:[%s589 + $0x5c] sm:$0xf]
  %v614 = vld [vmem:[%s589 + $0x60] sm:$0xf]
  %v615 = vld [vmem:[%s589 + $0x64] sm:$0xf]
  %v616 = vld [vmem:[%s589 + $0x68] sm:$0xf]
  %v617 = vld [vmem:[%s589 + $0x6c] sm:$0xf]
  %v618 = vld [vmem:[%s589 + $0x70] sm:$0xf]
  %v619 = vld [vmem:[%s589 + $0x74] sm:$0xf]
  %v620 = vld [vmem:[%s589 + $0x78] sm:$0xf]
  %v621 = vld [vmem:[%s589 + $0x7c] sm:$0xf]
  %v622 = vpack.c.bf16 %v554, %v553
  %v623 = vpack.c.bf16 %v556, %v555
  %v624 = vpack.c.bf16 %v558, %v557
  %v625 = vpack.c.bf16 %v560, %v559
  %v626 = vpack.c.bf16 %v562, %v561
  %v627 = vpack.c.bf16 %v564, %v563
  %v628 = vpack.c.bf16 %v566, %v565
  %v629 = vpack.c.bf16 %v568, %v567
  %v630 = vpack.c.bf16 %v570, %v569
  %v631 = vpack.c.bf16 %v572, %v571
  %v632 = vpack.c.bf16 %v574, %v573
  %v633 = vpack.c.bf16 %v576, %v575
  %v634 = vpack.c.bf16 %v578, %v577
  %v635 = vpack.c.bf16 %v580, %v579
  %v636 = vpack.c.bf16 %v582, %v581
  %v637 = vpack.c.bf16 %v584, %v583
  %v638 = vld [vmem:[%s3] sm:$0xf]
  %v639 = vld [vmem:[%s3 + $0x4] sm:$0xf]
  %v640 = vld [vmem:[%s3 + $0x8] sm:$0xf]
  %v641 = vld [vmem:[%s3 + $0xc] sm:$0xf]
  %v642 = vld [vmem:[%s3 + $0x10] sm:$0xf]
  %v643 = vld [vmem:[%s3 + $0x14] sm:$0xf]
  %v644 = vld [vmem:[%s3 + $0x18] sm:$0xf]
  %v645 = vld [vmem:[%s3 + $0x1c] sm:$0xf]
  %v646 = vld [vmem:[%s3 + $0x20] sm:$0xf]
  %v647 = vld [vmem:[%s3 + $0x24] sm:$0xf]
  %v648 = vld [vmem:[%s3 + $0x28] sm:$0xf]
  %v649 = vld [vmem:[%s3 + $0x2c] sm:$0xf]
  %v650 = vld [vmem:[%s3 + $0x30] sm:$0xf]
  %v651 = vld [vmem:[%s3 + $0x34] sm:$0xf]
  %v652 = vld [vmem:[%s3 + $0x38] sm:$0xf]
  %v653 = vld [vmem:[%s3 + $0x3c] sm:$0xf]
  %v654 = vld [vmem:[%s4] sm:$0xf]
  %v655 = vld [vmem:[%s4 + $0x4] sm:$0xf]
  %v656 = vld [vmem:[%s4 + $0x8] sm:$0xf]
  %v657 = vld [vmem:[%s4 + $0xc] sm:$0xf]
  %v658 = vld [vmem:[%s4 + $0x10] sm:$0xf]
  %v659 = vld [vmem:[%s4 + $0x14] sm:$0xf]
  %v660 = vld [vmem:[%s4 + $0x18] sm:$0xf]
  %v661 = vld [vmem:[%s4 + $0x1c] sm:$0xf]
  %v662 = vld [vmem:[%s4 + $0x20] sm:$0xf]
  %v663 = vld [vmem:[%s4 + $0x24] sm:$0xf]
  %v664 = vld [vmem:[%s4 + $0x28] sm:$0xf]
  %v665 = vld [vmem:[%s4 + $0x2c] sm:$0xf]
  %v666 = vld [vmem:[%s4 + $0x30] sm:$0xf]
  %v667 = vld [vmem:[%s4 + $0x34] sm:$0xf]
  %v668 = vld [vmem:[%s4 + $0x38] sm:$0xf]
  %v669 = vld [vmem:[%s4 + $0x3c] sm:$0xf]
  %v702 = vunpack.c.l.b16 %v590
  %v703 = vunpack.c.l.b16 %v591
  %v704 = vunpack.c.l.b16 %v592
  %v705 = vunpack.c.l.b16 %v593
  %v706 = vunpack.c.l.b16 %v594
  %v707 = vunpack.c.l.b16 %v595
  %v708 = vunpack.c.l.b16 %v596
  %v709 = vunpack.c.l.b16 %v597
  %v710 = vunpack.c.l.b16 %v598
  %v711 = vunpack.c.l.b16 %v599
  %v712 = vunpack.c.l.b16 %v600
  %v713 = vunpack.c.l.b16 %v601
  %v714 = vunpack.c.l.b16 %v602
  %v715 = vunpack.c.l.b16 %v603
  %v716 = vunpack.c.l.b16 %v604
  %v717 = vunpack.c.l.b16 %v605
  %v718 = vunpack.c.l.b16 %v606
  %v719 = vunpack.c.l.b16 %v607
  %v720 = vunpack.c.l.b16 %v608
  %v721 = vunpack.c.l.b16 %v609
  %v722 = vunpack.c.l.b16 %v610
  %v723 = vunpack.c.l.b16 %v611
  %v724 = vunpack.c.l.b16 %v612
  %v725 = vunpack.c.l.b16 %v613
  %v726 = vunpack.c.l.b16 %v614
  %v727 = vunpack.c.l.b16 %v615
  %v728 = vunpack.c.l.b16 %v616
  %v729 = vunpack.c.l.b16 %v617
  %v730 = vunpack.c.l.b16 %v618
  %v731 = vunpack.c.l.b16 %v619
  %v732 = vunpack.c.l.b16 %v620
  %v733 = vunpack.c.l.b16 %v621
  %v734 = vpack.c.b16 %v703, %v702
  %v735 = vpack.c.b16 %v705, %v704
  %v736 = vpack.c.b16 %v707, %v706
  %v737 = vpack.c.b16 %v709, %v708
  %v738 = vpack.c.b16 %v711, %v710
  %v739 = vpack.c.b16 %v713, %v712
  %v740 = vpack.c.b16 %v715, %v714
  %v741 = vpack.c.b16 %v717, %v716
  %v742 = vpack.c.b16 %v719, %v718
  %v743 = vpack.c.b16 %v721, %v720
  %v744 = vpack.c.b16 %v723, %v722
  %v745 = vpack.c.b16 %v725, %v724
  %v746 = vpack.c.b16 %v727, %v726
  %v747 = vpack.c.b16 %v729, %v728
  %v748 = vpack.c.b16 %v731, %v730
  %v749 = vpack.c.b16 %v733, %v732
  %v782 = vunpack.c.l.b16 %v654
  %v783 = vunpack.c.l.b16 %v655
  %v784 = vunpack.c.l.b16 %v656
  %v785 = vunpack.c.l.b16 %v657
  %v786 = vunpack.c.l.b16 %v658
  %v787 = vunpack.c.l.b16 %v659
  %v788 = vunpack.c.l.b16 %v660
  %v789 = vunpack.c.l.b16 %v661
  %v790 = vunpack.c.l.b16 %v662
  %v791 = vunpack.c.l.b16 %v663
  %v792 = vunpack.c.l.b16 %v664
  %v793 = vunpack.c.l.b16 %v665
  %v794 = vunpack.c.l.b16 %v666
  %v795 = vunpack.c.l.b16 %v667
  %v796 = vunpack.c.l.b16 %v668
  %v797 = vunpack.c.l.b16 %v669
  %v798 = vpack.c.b16 %v783, %v782
  %v799 = vpack.c.b16 %v785, %v784
  %v800 = vpack.c.b16 %v787, %v786
  %v801 = vpack.c.b16 %v789, %v788
  %v802 = vpack.c.b16 %v791, %v790
  %v803 = vpack.c.b16 %v793, %v792
  %v804 = vpack.c.b16 %v795, %v794
  %v805 = vpack.c.b16 %v797, %v796
  %814 = vmatprep.subr.bf16.mxu0 0
  %815 = vmatpush1.bf16.msra.mxu0 %v805
  %816 = vmatprep.subr.bf16.mxu0 0
  %817 = vmatpush1.bf16.msra.mxu0 %v804
  %818 = vmatprep.subr.bf16.mxu0 0
  %819 = vmatpush1.bf16.msra.mxu0 %v803
  %820 = vmatprep.subr.bf16.mxu0 0
  %821 = vmatpush1.bf16.msra.mxu0 %v802
  %822 = vmatprep.subr.bf16.mxu0 0
  %823 = vmatpush1.bf16.msra.mxu0 %v801
  %824 = vmatprep.subr.bf16.mxu0 0
  %825 = vmatpush1.bf16.msra.mxu0 %v800
  %826 = vmatprep.subr.bf16.mxu0 0
  %827 = vmatpush1.bf16.msra.mxu0 %v799
  %828 = vmatprep.subr.bf16.mxu0 0
  %829 = vmatpush1.bf16.msra.mxu0 %v798
  %830 = vmatprep.subr.bf16.mxu0 0
  %831 = vmatpush2.bf16.msra.mxu0 0
  %832 = vmatprep.subr.bf16.mxu0 0
  %833 = vmatpush2.bf16.msra.mxu0 0
  %834 = vmatprep.subr.bf16.mxu0 0
  %835 = vmatpush2.bf16.msra.mxu0 0
  %836 = vmatprep.subr.bf16.mxu0 0
  %837 = vmatpush2.bf16.msra.mxu0 0
  %838 = vmatprep.subr.bf16.mxu0 0
  %839 = vmatpush2.bf16.msra.mxu0 0
  %840 = vmatprep.subr.bf16.mxu0 0
  %841 = vmatpush2.bf16.msra.mxu0 0
  %842 = vmatprep.subr.bf16.mxu0 0
  %843 = vmatpush2.bf16.msra.mxu0 0
  %844 = vmatprep.subr.bf16.mxu0 0
  %845 = vmatpush2.bf16.msra.mxu0 0
  %846 = vmatprep.mubr.bf16.mxu0 0
  %847 = vmatmul.mubr.bf16.gmra.mxu0 %v734
  %v848 = vpop.f32.mrf.mxu0
  %v849 = vadd.f32 0.0, %v848
  %v850 = vpop.f32.mrf.mxu0
  %v851 = vpop.f32.mrf.mxu0
  %v852 = vadd.f32 0.0, %v851
  %v853 = vpop.f32.mrf.mxu0
  %854 = vmatprep.mubr.bf16.mxu0 0
  %855 = vmatmul.mubr.bf16.gmra.mxu0 %v735
  %v856 = vpop.f32.mrf.mxu0
  %v857 = vadd.f32 0.0, %v856
  %v858 = vpop.f32.mrf.mxu0
  %v859 = vpop.f32.mrf.mxu0
  %v860 = vadd.f32 0.0, %v859
  %v861 = vpop.f32.mrf.mxu0
  %862 = vmatprep.mubr.bf16.mxu0 0
  %863 = vmatmul.mubr.bf16.gmra.mxu0 %v736
  %v864 = vpop.f32.mrf.mxu0
  %v865 = vadd.f32 0.0, %v864
  %v866 = vpop.f32.mrf.mxu0
  %v867 = vpop.f32.mrf.mxu0
  %v868 = vadd.f32 0.0, %v867
  %v869 = vpop.f32.mrf.mxu0
  %870 = vmatprep.mubr.bf16.mxu0 0
  %871 = vmatmul.mubr.bf16.gmra.mxu0 %v737
  %v872 = vpop.f32.mrf.mxu0
  %v873 = vadd.f32 0.0, %v872
  %v874 = vpop.f32.mrf.mxu0
  %v875 = vpop.f32.mrf.mxu0
  %v876 = vadd.f32 0.0, %v875
  %v877 = vpop.f32.mrf.mxu0
  %878 = vmatprep.mubr.bf16.mxu0 0
  %879 = vmatmul.mubr.bf16.gmra.mxu0 %v738
  %v880 = vpop.f32.mrf.mxu0
  %v881 = vadd.f32 0.0, %v880
  %v882 = vpop.f32.mrf.mxu0
  %v883 = vpop.f32.mrf.mxu0
  %v884 = vadd.f32 0.0, %v883
  %v885 = vpop.f32.mrf.mxu0
  %886 = vmatprep.mubr.bf16.mxu0 0
  %887 = vmatmul.mubr.bf16.gmra.mxu0 %v739
  %v888 = vpop.f32.mrf.mxu0
  %v889 = vadd.f32 0.0, %v888
  %v890 = vpop.f32.mrf.mxu0
  %v891 = vpop.f32.mrf.mxu0
  %v892 = vadd.f32 0.0, %v891
  %v893 = vpop.f32.mrf.mxu0
  %894 = vmatprep.mubr.bf16.mxu0 0
  %895 = vmatmul.mubr.bf16.gmra.mxu0 %v740
  %v896 = vpop.f32.mrf.mxu0
  %v897 = vadd.f32 0.0, %v896
  %v898 = vpop.f32.mrf.mxu0
  %v899 = vpop.f32.mrf.mxu0
  %v900 = vadd.f32 0.0, %v899
  %v901 = vpop.f32.mrf.mxu0
  %902 = vmatprep.mubr.bf16.mxu0 0
  %903 = vmatmul.mubr.bf16.gmra.mxu0 %v741
  %v904 = vpop.f32.mrf.mxu0
  %v905 = vadd.f32 0.0, %v904
  %v906 = vpop.f32.mrf.mxu0
  %v907 = vpop.f32.mrf.mxu0
  %v908 = vadd.f32 0.0, %v907
  %v909 = vpop.f32.mrf.mxu0
  %910 = vmatprep.mubr.bf16.mxu0 0
  %911 = vmatmul.mubr.bf16.gmra.mxu0 %v742
  %v912 = vpop.f32.mrf.mxu0
  %v913 = vadd.f32 0.0, %v912
  %v914 = vpop.f32.mrf.mxu0
  %v915 = vpop.f32.mrf.mxu0
  %v916 = vadd.f32 0.0, %v915
  %v917 = vpop.f32.mrf.mxu0
  %918 = vmatprep.mubr.bf16.mxu0 0
  %919 = vmatmul.mubr.bf16.gmra.mxu0 %v743
  %v920 = vpop.f32.mrf.mxu0
  %v921 = vadd.f32 0.0, %v920
  %v922 = vpop.f32.mrf.mxu0
  %v923 = vpop.f32.mrf.mxu0
  %v924 = vadd.f32 0.0, %v923
  %v925 = vpop.f32.mrf.mxu0
  %926 = vmatprep.mubr.bf16.mxu0 0
  %927 = vmatmul.mubr.bf16.gmra.mxu0 %v744
  %v928 = vpop.f32.mrf.mxu0
  %v929 = vadd.f32 0.0, %v928
  %v930 = vpop.f32.mrf.mxu0
  %v931 = vpop.f32.mrf.mxu0
  %v932 = vadd.f32 0.0, %v931
  %v933 = vpop.f32.mrf.mxu0
  %934 = vmatprep.mubr.bf16.mxu0 0
  %935 = vmatmul.mubr.bf16.gmra.mxu0 %v745
  %v936 = vpop.f32.mrf.mxu0
  %v937 = vadd.f32 0.0, %v936
  %v938 = vpop.f32.mrf.mxu0
  %v939 = vpop.f32.mrf.mxu0
  %v940 = vadd.f32 0.0, %v939
  %v941 = vpop.f32.mrf.mxu0
  %942 = vmatprep.mubr.bf16.mxu0 0
  %943 = vmatmul.mubr.bf16.gmra.mxu0 %v746
  %v944 = vpop.f32.mrf.mxu0
  %v945 = vadd.f32 0.0, %v944
  %v946 = vpop.f32.mrf.mxu0
  %v947 = vpop.f32.mrf.mxu0
  %v948 = vadd.f32 0.0, %v947
  %v949 = vpop.f32.mrf.mxu0
  %950 = vmatprep.mubr.bf16.mxu0 0
  %951 = vmatmul.mubr.bf16.gmra.mxu0 %v747
  %v952 = vpop.f32.mrf.mxu0
  %v953 = vadd.f32 0.0, %v952
  %v954 = vpop.f32.mrf.mxu0
  %v955 = vpop.f32.mrf.mxu0
  %v956 = vadd.f32 0.0, %v955
  %v957 = vpop.f32.mrf.mxu0
  %958 = vmatprep.mubr.bf16.mxu0 0
  %959 = vmatmul.mubr.bf16.gmra.mxu0 %v748
  %v960 = vpop.f32.mrf.mxu0
  %v961 = vadd.f32 0.0, %v960
  %v962 = vpop.f32.mrf.mxu0
  %v963 = vpop.f32.mrf.mxu0
  %v964 = vadd.f32 0.0, %v963
  %v965 = vpop.f32.mrf.mxu0
  %966 = vmatprep.mubr.bf16.mxu0 0
  %967 = vmatmul.mubr.bf16.gmra.mxu0 %v749
  %v968 = vpop.f32.mrf.mxu0
  %v969 = vadd.f32 0.0, %v968
  %v970 = vpop.f32.mrf.mxu0
  %v971 = vpop.f32.mrf.mxu0
  %v972 = vadd.f32 0.0, %v971
  %v973 = vpop.f32.mrf.mxu0
  %974 = vdwg.mxu0
  %v991 = vunpack.c.l.b16 %v638
  %v992 = vunpack.c.l.b16 %v639
  %v993 = vunpack.c.l.b16 %v640
  %v994 = vunpack.c.l.b16 %v641
  %v995 = vunpack.c.l.b16 %v642
  %v996 = vunpack.c.l.b16 %v643
  %v997 = vunpack.c.l.b16 %v644
  %v998 = vunpack.c.l.b16 %v645
  %v999 = vunpack.c.l.b16 %v646
  %v1000 = vunpack.c.l.b16 %v647
  %v1001 = vunpack.c.l.b16 %v648
  %v1002 = vunpack.c.l.b16 %v649
  %v1003 = vunpack.c.l.b16 %v650
  %v1004 = vunpack.c.l.b16 %v651
  %v1005 = vunpack.c.l.b16 %v652
  %v1006 = vunpack.c.l.b16 %v653
  %v1007 = vpack.c.b16 %v992, %v991
  %v1008 = vpack.c.b16 %v994, %v993
  %v1009 = vpack.c.b16 %v996, %v995
  %v1010 = vpack.c.b16 %v998, %v997
  %v1011 = vpack.c.b16 %v1000, %v999
  %v1012 = vpack.c.b16 %v1002, %v1001
  %v1013 = vpack.c.b16 %v1004, %v1003
  %v1014 = vpack.c.b16 %v1006, %v1005
  %1023 = vmatprep.subr.bf16.mxu0 0
  %1024 = vmatpush1.bf16.msra.mxu0 %v1014
  %1025 = vmatprep.subr.bf16.mxu0 0
  %1026 = vmatpush1.bf16.msra.mxu0 %v1013
  %1027 = vmatprep.subr.bf16.mxu0 0
  %1028 = vmatpush1.bf16.msra.mxu0 %v1012
  %1029 = vmatprep.subr.bf16.mxu0 0
  %1030 = vmatpush1.bf16.msra.mxu0 %v1011
  %1031 = vmatprep.subr.bf16.mxu0 0
  %1032 = vmatpush1.bf16.msra.mxu0 %v1010
  %1033 = vmatprep.subr.bf16.mxu0 0
  %1034 = vmatpush1.bf16.msra.mxu0 %v1009
  %1035 = vmatprep.subr.bf16.mxu0 0
  %1036 = vmatpush1.bf16.msra.mxu0 %v1008
  %1037 = vmatprep.subr.bf16.mxu0 0
  %1038 = vmatpush1.bf16.msra.mxu0 %v1007
  %1039 = vmatprep.subr.bf16.mxu0 0
  %1040 = vmatpush2.bf16.msra.mxu0 0
  %1041 = vmatprep.subr.bf16.mxu0 0
  %1042 = vmatpush2.bf16.msra.mxu0 0
  %1043 = vmatprep.subr.bf16.mxu0 0
  %1044 = vmatpush2.bf16.msra.mxu0 0
  %1045 = vmatprep.subr.bf16.mxu0 0
  %1046 = vmatpush2.bf16.msra.mxu0 0
  %1047 = vmatprep.subr.bf16.mxu0 0
  %1048 = vmatpush2.bf16.msra.mxu0 0
  %1049 = vmatprep.subr.bf16.mxu0 0
  %1050 = vmatpush2.bf16.msra.mxu0 0
  %1051 = vmatprep.subr.bf16.mxu0 0
  %1052 = vmatpush2.bf16.msra.mxu0 0
  %1053 = vmatprep.subr.bf16.mxu0 0
  %1054 = vmatpush2.bf16.msra.mxu0 0
  %1055 = vmatprep.mubr.bf16.mxu0 0
  %1056 = vmatmul.mubr.bf16.gmra.mxu0 %v622
  %v1057 = vpop.f32.mrf.mxu0
  %v1058 = vadd.f32 %v849, %v1057
  %v1059 = vpop.f32.mrf.mxu0
  %v1060 = vpop.f32.mrf.mxu0
  %v1061 = vadd.f32 %v852, %v1060
  %v1062 = vpop.f32.mrf.mxu0
  %1063 = vmatprep.mubr.bf16.mxu0 0
  %1064 = vmatmul.mubr.bf16.gmra.mxu0 %v623
  %v1065 = vpop.f32.mrf.mxu0
  %v1066 = vadd.f32 %v857, %v1065
  %v1067 = vpop.f32.mrf.mxu0
  %v1068 = vpop.f32.mrf.mxu0
  %v1069 = vadd.f32 %v860, %v1068
  %v1070 = vpop.f32.mrf.mxu0
  %1071 = vmatprep.mubr.bf16.mxu0 0
  %1072 = vmatmul.mubr.bf16.gmra.mxu0 %v624
  %v1073 = vpop.f32.mrf.mxu0
  %v1074 = vadd.f32 %v865, %v1073
  %v1075 = vpop.f32.mrf.mxu0
  %v1076 = vpop.f32.mrf.mxu0
  %v1077 = vadd.f32 %v868, %v1076
  %v1078 = vpop.f32.mrf.mxu0
  %1079 = vmatprep.mubr.bf16.mxu0 0
  %1080 = vmatmul.mubr.bf16.gmra.mxu0 %v625
  %v1081 = vpop.f32.mrf.mxu0
  %v1082 = vadd.f32 %v873, %v1081
  %v1083 = vpop.f32.mrf.mxu0
  %v1084 = vpop.f32.mrf.mxu0
  %v1085 = vadd.f32 %v876, %v1084
  %v1086 = vpop.f32.mrf.mxu0
  %1087 = vmatprep.mubr.bf16.mxu0 0
  %1088 = vmatmul.mubr.bf16.gmra.mxu0 %v626
  %v1089 = vpop.f32.mrf.mxu0
  %v1090 = vadd.f32 %v881, %v1089
  %v1091 = vpop.f32.mrf.mxu0
  %v1092 = vpop.f32.mrf.mxu0
  %v1093 = vadd.f32 %v884, %v1092
  %v1094 = vpop.f32.mrf.mxu0
  %1095 = vmatprep.mubr.bf16.mxu0 0
  %1096 = vmatmul.mubr.bf16.gmra.mxu0 %v627
  %v1097 = vpop.f32.mrf.mxu0
  %v1098 = vadd.f32 %v889, %v1097
  %v1099 = vpop.f32.mrf.mxu0
  %v1100 = vpop.f32.mrf.mxu0
  %v1101 = vadd.f32 %v892, %v1100
  %v1102 = vpop.f32.mrf.mxu0
  %1103 = vmatprep.mubr.bf16.mxu0 0
  %1104 = vmatmul.mubr.bf16.gmra.mxu0 %v628
  %v1105 = vpop.f32.mrf.mxu0
  %v1106 = vadd.f32 %v897, %v1105
  %v1107 = vpop.f32.mrf.mxu0
  %v1108 = vpop.f32.mrf.mxu0
  %v1109 = vadd.f32 %v900, %v1108
  %v1110 = vpop.f32.mrf.mxu0
  %1111 = vmatprep.mubr.bf16.mxu0 0
  %1112 = vmatmul.mubr.bf16.gmra.mxu0 %v629
  %v1113 = vpop.f32.mrf.mxu0
  %v1114 = vadd.f32 %v905, %v1113
  %v1115 = vpop.f32.mrf.mxu0
  %v1116 = vpop.f32.mrf.mxu0
  %v1117 = vadd.f32 %v908, %v1116
  %v1118 = vpop.f32.mrf.mxu0
  %1119 = vmatprep.mubr.bf16.mxu0 0
  %1120 = vmatmul.mubr.bf16.gmra.mxu0 %v630
  %v1121 = vpop.f32.mrf.mxu0
  %v1122 = vadd.f32 %v913, %v1121
  %v1123 = vpop.f32.mrf.mxu0
  %v1124 = vpop.f32.mrf.mxu0
  %v1125 = vadd.f32 %v916, %v1124
  %v1126 = vpop.f32.mrf.mxu0
  %1127 = vmatprep.mubr.bf16.mxu0 0
  %1128 = vmatmul.mubr.bf16.gmra.mxu0 %v631
  %v1129 = vpop.f32.mrf.mxu0
  %v1130 = vadd.f32 %v921, %v1129
  %v1131 = vpop.f32.mrf.mxu0
  %v1132 = vpop.f32.mrf.mxu0
  %v1133 = vadd.f32 %v924, %v1132
  %v1134 = vpop.f32.mrf.mxu0
  %1135 = vmatprep.mubr.bf16.mxu0 0
  %1136 = vmatmul.mubr.bf16.gmra.mxu0 %v632
  %v1137 = vpop.f32.mrf.mxu0
  %v1138 = vadd.f32 %v929, %v1137
  %v1139 = vpop.f32.mrf.mxu0
  %v1140 = vpop.f32.mrf.mxu0
  %v1141 = vadd.f32 %v932, %v1140
  %v1142 = vpop.f32.mrf.mxu0
  %1143 = vmatprep.mubr.bf16.mxu0 0
  %1144 = vmatmul.mubr.bf16.gmra.mxu0 %v633
  %v1145 = vpop.f32.mrf.mxu0
  %v1146 = vadd.f32 %v937, %v1145
  %v1147 = vpop.f32.mrf.mxu0
  %v1148 = vpop.f32.mrf.mxu0
  %v1149 = vadd.f32 %v940, %v1148
  %v1150 = vpop.f32.mrf.mxu0
  %1151 = vmatprep.mubr.bf16.mxu0 0
  %1152 = vmatmul.mubr.bf16.gmra.mxu0 %v634
  %v1153 = vpop.f32.mrf.mxu0
  %v1154 = vadd.f32 %v945, %v1153
  %v1155 = vpop.f32.mrf.mxu0
  %v1156 = vpop.f32.mrf.mxu0
  %v1157 = vadd.f32 %v948, %v1156
  %v1158 = vpop.f32.mrf.mxu0
  %1159 = vmatprep.mubr.bf16.mxu0 0
  %1160 = vmatmul.mubr.bf16.gmra.mxu0 %v635
  %v1161 = vpop.f32.mrf.mxu0
  %v1162 = vadd.f32 %v953, %v1161
  %v1163 = vpop.f32.mrf.mxu0
  %v1164 = vpop.f32.mrf.mxu0
  %v1165 = vadd.f32 %v956, %v1164
  %v1166 = vpop.f32.mrf.mxu0
  %1167 = vmatprep.mubr.bf16.mxu0 0
  %1168 = vmatmul.mubr.bf16.gmra.mxu0 %v636
  %v1169 = vpop.f32.mrf.mxu0
  %v1170 = vadd.f32 %v961, %v1169
  %v1171 = vpop.f32.mrf.mxu0
  %v1172 = vpop.f32.mrf.mxu0
  %v1173 = vadd.f32 %v964, %v1172
  %v1174 = vpop.f32.mrf.mxu0
  %1175 = vmatprep.mubr.bf16.mxu0 0
  %1176 = vmatmul.mubr.bf16.gmra.mxu0 %v637
  %v1177 = vpop.f32.mrf.mxu0
  %v1178 = vadd.f32 %v969, %v1177
  %v1179 = vpop.f32.mrf.mxu0
  %v1180 = vpop.f32.mrf.mxu0
  %v1181 = vadd.f32 %v972, %v1180
  %v1182 = vpop.f32.mrf.mxu0
  %1183 = vdwg.mxu0
  %v1184 = vld [vmem:[%s5] sm:$0x1]
  %v1186 = vlaneseq
  %v1187 = vshrl.u32 %v1186, 7
  %v1188 = vsub.s32 0, %v1187
  %v1189 = vrot.slane %v1184, %v1188
  %v1191 = vadd.f32 %v1058, %v1189
  %v1192 = vadd.f32 %v1061, %v1189
  %v1193 = vadd.f32 %v1066, %v1189
  %v1194 = vadd.f32 %v1069, %v1189
  %v1195 = vadd.f32 %v1074, %v1189
  %v1196 = vadd.f32 %v1077, %v1189
  %v1197 = vadd.f32 %v1082, %v1189
  %v1198 = vadd.f32 %v1085, %v1189
  %v1199 = vadd.f32 %v1090, %v1189
  %v1200 = vadd.f32 %v1093, %v1189
  %v1201 = vadd.f32 %v1098, %v1189
  %v1202 = vadd.f32 %v1101, %v1189
  %v1203 = vadd.f32 %v1106, %v1189
  %v1204 = vadd.f32 %v1109, %v1189
  %v1205 = vadd.f32 %v1114, %v1189
  %v1206 = vadd.f32 %v1117, %v1189
  %v1207 = vadd.f32 %v1122, %v1189
  %v1208 = vadd.f32 %v1125, %v1189
  %v1209 = vadd.f32 %v1130, %v1189
  %v1210 = vadd.f32 %v1133, %v1189
  %v1211 = vadd.f32 %v1138, %v1189
  %v1212 = vadd.f32 %v1141, %v1189
  %v1213 = vadd.f32 %v1146, %v1189
  %v1214 = vadd.f32 %v1149, %v1189
  %v1215 = vadd.f32 %v1154, %v1189
  %v1216 = vadd.f32 %v1157, %v1189
  %v1217 = vadd.f32 %v1162, %v1189
  %v1218 = vadd.f32 %v1165, %v1189
  %v1219 = vadd.f32 %v1170, %v1189
  %v1220 = vadd.f32 %v1173, %v1189
  %v1221 = vadd.f32 %v1178, %v1189
  %v1222 = vadd.f32 %v1181, %v1189
  %v1223 = vmax.f32 %v1191, 0.0
  %v1224 = vmax.f32 %v1192, 0.0
  %v1225 = vmax.f32 %v1193, 0.0
  %v1226 = vmax.f32 %v1194, 0.0
  %v1227 = vmax.f32 %v1195, 0.0
  %v1228 = vmax.f32 %v1196, 0.0
  %v1229 = vmax.f32 %v1197, 0.0
  %v1230 = vmax.f32 %v1198, 0.0
  %v1231 = vmax.f32 %v1199, 0.0
  %v1232 = vmax.f32 %v1200, 0.0
  %v1233 = vmax.f32 %v1201, 0.0
  %v1234 = vmax.f32 %v1202, 0.0
  %v1235 = vmax.f32 %v1203, 0.0
  %v1236 = vmax.f32 %v1204, 0.0
  %v1237 = vmax.f32 %v1205, 0.0
  %v1238 = vmax.f32 %v1206, 0.0
  %v1239 = vmax.f32 %v1207, 0.0
  %v1240 = vmax.f32 %v1208, 0.0
  %v1241 = vmax.f32 %v1209, 0.0
  %v1242 = vmax.f32 %v1210, 0.0
  %v1243 = vmax.f32 %v1211, 0.0
  %v1244 = vmax.f32 %v1212, 0.0
  %v1245 = vmax.f32 %v1213, 0.0
  %v1246 = vmax.f32 %v1214, 0.0
  %v1247 = vmax.f32 %v1215, 0.0
  %v1248 = vmax.f32 %v1216, 0.0
  %v1249 = vmax.f32 %v1217, 0.0
  %v1250 = vmax.f32 %v1218, 0.0
  %v1251 = vmax.f32 %v1219, 0.0
  %v1252 = vmax.f32 %v1220, 0.0
  %v1253 = vmax.f32 %v1221, 0.0
  %v1254 = vmax.f32 %v1222, 0.0
  %v1255 = vpack.c.bf16 %v1224, %v1223
  %v1256 = vpack.c.bf16 %v1226, %v1225
  %v1257 = vpack.c.bf16 %v1228, %v1227
  %v1258 = vpack.c.bf16 %v1230, %v1229
  %v1259 = vpack.c.bf16 %v1232, %v1231
  %v1260 = vpack.c.bf16 %v1234, %v1233
  %v1261 = vpack.c.bf16 %v1236, %v1235
  %v1262 = vpack.c.bf16 %v1238, %v1237
  %v1263 = vpack.c.bf16 %v1240, %v1239
  %v1264 = vpack.c.bf16 %v1242, %v1241
  %v1265 = vpack.c.bf16 %v1244, %v1243
  %v1266 = vpack.c.bf16 %v1246, %v1245
  %v1267 = vpack.c.bf16 %v1248, %v1247
  %v1268 = vpack.c.bf16 %v1250, %v1249
  %v1269 = vpack.c.bf16 %v1252, %v1251
  %v1270 = vpack.c.bf16 %v1254, %v1253
  %v1287 = vunpack.c.l.b16 %v1255
  %v1288 = vunpack.c.h.b16 %v1255
  %v1289 = vunpack.c.l.b16 %v1256
  %v1290 = vunpack.c.h.b16 %v1256
  %v1291 = vunpack.c.l.b16 %v1257
  %v1292 = vunpack.c.h.b16 %v1257
  %v1293 = vunpack.c.l.b16 %v1258
  %v1294 = vunpack.c.h.b16 %v1258
  %v1295 = vunpack.c.l.b16 %v1259
  %v1296 = vunpack.c.h.b16 %v1259
  %v1297 = vunpack.c.l.b16 %v1260
  %v1298 = vunpack.c.h.b16 %v1260
  %v1299 = vunpack.c.l.b16 %v1261
  %v1300 = vunpack.c.h.b16 %v1261
  %v1301 = vunpack.c.l.b16 %v1262
  %v1302 = vunpack.c.h.b16 %v1262
  %v1303 = vunpack.c.l.b16 %v1263
  %v1304 = vunpack.c.h.b16 %v1263
  %v1305 = vunpack.c.l.b16 %v1264
  %v1306 = vunpack.c.h.b16 %v1264
  %v1307 = vunpack.c.l.b16 %v1265
  %v1308 = vunpack.c.h.b16 %v1265
  %v1309 = vunpack.c.l.b16 %v1266
  %v1310 = vunpack.c.h.b16 %v1266
  %v1311 = vunpack.c.l.b16 %v1267
  %v1312 = vunpack.c.h.b16 %v1267
  %v1313 = vunpack.c.l.b16 %v1268
  %v1314 = vunpack.c.h.b16 %v1268
  %v1315 = vunpack.c.l.b16 %v1269
  %v1316 = vunpack.c.h.b16 %v1269
  %v1317 = vunpack.c.l.b16 %v1270
  %v1318 = vunpack.c.h.b16 %v1270
  %v1319 = vpack.c.b16 %v1287, %v1287
  %v1320 = vpack.c.b16 %v1288, %v1288
  %v1321 = vpack.c.b16 %v1289, %v1289
  %v1322 = vpack.c.b16 %v1290, %v1290
  %v1323 = vpack.c.b16 %v1291, %v1291
  %v1324 = vpack.c.b16 %v1292, %v1292
  %v1325 = vpack.c.b16 %v1293, %v1293
  %v1326 = vpack.c.b16 %v1294, %v1294
  %v1327 = vpack.c.b16 %v1295, %v1295
  %v1328 = vpack.c.b16 %v1296, %v1296
  %v1329 = vpack.c.b16 %v1297, %v1297
  %v1330 = vpack.c.b16 %v1298, %v1298
  %v1331 = vpack.c.b16 %v1299, %v1299
  %v1332 = vpack.c.b16 %v1300, %v1300
  %v1333 = vpack.c.b16 %v1301, %v1301
  %v1334 = vpack.c.b16 %v1302, %v1302
  %v1335 = vpack.c.b16 %v1303, %v1303
  %v1336 = vpack.c.b16 %v1304, %v1304
  %v1337 = vpack.c.b16 %v1305, %v1305
  %v1338 = vpack.c.b16 %v1306, %v1306
  %v1339 = vpack.c.b16 %v1307, %v1307
  %v1340 = vpack.c.b16 %v1308, %v1308
  %v1341 = vpack.c.b16 %v1309, %v1309
  %v1342 = vpack.c.b16 %v1310, %v1310
  %v1343 = vpack.c.b16 %v1311, %v1311
  %v1344 = vpack.c.b16 %v1312, %v1312
  %v1345 = vpack.c.b16 %v1313, %v1313
  %v1346 = vpack.c.b16 %v1314, %v1314
  %v1347 = vpack.c.b16 %v1315, %v1315
  %v1348 = vpack.c.b16 %v1316, %v1316
  %v1349 = vpack.c.b16 %v1317, %v1317
  %v1350 = vpack.c.b16 %v1318, %v1318
  %1383 = vst [vmem:[%s6] sm:$0xf] %v1319
  %1384 = vst [vmem:[%s6 + $0x4] sm:$0xf] %v1320
  %1385 = vst [vmem:[%s6 + $0x8] sm:$0xf] %v1321
  %1386 = vst [vmem:[%s6 + $0xc] sm:$0xf] %v1322
  %1387 = vst [vmem:[%s6 + $0x10] sm:$0xf] %v1323
  %1388 = vst [vmem:[%s6 + $0x14] sm:$0xf] %v1324
  %1389 = vst [vmem:[%s6 + $0x18] sm:$0xf] %v1325
  %1390 = vst [vmem:[%s6 + $0x1c] sm:$0xf] %v1326
  %1391 = vst [vmem:[%s6 + $0x20] sm:$0xf] %v1327
  %1392 = vst [vmem:[%s6 + $0x24] sm:$0xf] %v1328
  %1393 = vst [vmem:[%s6 + $0x28] sm:$0xf] %v1329
  %1394 = vst [vmem:[%s6 + $0x2c] sm:$0xf] %v1330
  %1395 = vst [vmem:[%s6 + $0x30] sm:$0xf] %v1331
  %1396 = vst [vmem:[%s6 + $0x34] sm:$0xf] %v1332
  %1397 = vst [vmem:[%s6 + $0x38] sm:$0xf] %v1333
  %1398 = vst [vmem:[%s6 + $0x3c] sm:$0xf] %v1334
  %1399 = vst [vmem:[%s6 + $0x40] sm:$0xf] %v1335
  %1400 = vst [vmem:[%s6 + $0x44] sm:$0xf] %v1336
  %1401 = vst [vmem:[%s6 + $0x48] sm:$0xf] %v1337
  %1402 = vst [vmem:[%s6 + $0x4c] sm:$0xf] %v1338
  %1403 = vst [vmem:[%s6 + $0x50] sm:$0xf] %v1339
  %1404 = vst [vmem:[%s6 + $0x54] sm:$0xf] %v1340
  %1405 = vst [vmem:[%s6 + $0x58] sm:$0xf] %v1341
  %1406 = vst [vmem:[%s6 + $0x5c] sm:$0xf] %v1342
  %1407 = vst [vmem:[%s6 + $0x60] sm:$0xf] %v1343
  %1408 = vst [vmem:[%s6 + $0x64] sm:$0xf] %v1344
  %1409 = vst [vmem:[%s6 + $0x68] sm:$0xf] %v1345
  %1410 = vst [vmem:[%s6 + $0x6c] sm:$0xf] %v1346
  %1411 = vst [vmem:[%s6 + $0x70] sm:$0xf] %v1347
  %1412 = vst [vmem:[%s6 + $0x74] sm:$0xf] %v1348
  %1413 = vst [vmem:[%s6 + $0x78] sm:$0xf] %v1349
  %1414 = vst [vmem:[%s6 + $0x7c] sm:$0xf] %v1350
  // Predicated region
  $region26: #{sage_forward.3} parent=0 // pred_check
    _
  $region27: #{sage_forward.3} parent=0 // pred_check_branch
    %1416 = sbr.rel (0) target = $region29
  $region28: #{sage_forward.3} parent=0 // pred_region
    _
  $region29: #{sage_forward.3} parent=0 // pred_fallthru
    _
  // Predicated region
  $region30: #{sage_forward.3} parent=0 // pred_check
    _
  $region31: #{sage_forward.3} parent=0 // pred_check_branch
    %1418 = sbr.rel (0) target = $region33
  $region32: #{sage_forward.3} parent=0 // pred_region
    _
  $region33: #{sage_forward.3} parent=0 // pred_fallthru
    _

</llo_original>
